<compile_context>
chip_gen: v7x
topology: tpu7x:2x2x1
jax: 0.10.0
libtpu: 0.0.40
codegen_flags: <defaults>
</compile_context>

<pallas_src>
import numpy as np
import jax
import jax.numpy as jnp
from jax.experimental import pallas as pl
from jax.experimental.pallas import tpu as pltpu

LANE = 128            # lane width; all channel dims padded to a multiple of this
MAX_ROW_TILE = 512    # row tile cap (working set per tile ~1 MiB -> fine on v7x)
VMEM_LIMIT = 32 * 1024 * 1024


def _round_up(x, m):
    return ((x + m - 1) // m) * m


def _row_tile(n, want_tiles=1):
    """Row tile: multiple of 8, capped at MAX_ROW_TILE; optionally split so the
    grid has >= want_tiles steps (keeps both v7x TensorCores busy when B==1)."""
    n = max(int(n), 8)
    t = min(MAX_ROW_TILE, _round_up(n, 8))
    if want_tiles > 1 and n > 8:
        t = min(t, _round_up(-(-n // want_tiles), 8))
        t = max(t, 8)
    return t


# ----------------------------------------------------------------------------------
# Pallas kernel 1: text-encoder position-wise MLP (no scalar conditioning)
#   y = gelu(x @ w1 + b1) @ w2 + b2, zeroed at rows >= tokens_lens[b]
# ----------------------------------------------------------------------------------
def _text_encoder_kernel(lens_ref, x_ref, w1_ref, b1_ref, w2_ref, b2_ref, o_ref):
    b = pl.program_id(0)
    st = pl.program_id(1)
    tm = x_ref.shape[0]
    h = jnp.dot(x_ref[...], w1_ref[...], preferred_element_type=jnp.float32)
    h = jax.nn.gelu(h + b1_ref[...])
    y = jnp.dot(h.astype(jnp.bfloat16), w2_ref[...],
                preferred_element_type=jnp.float32) + b2_ref[...]
    row = st * tm + jax.lax.broadcasted_iota(jnp.int32, (tm, 1), 0)
    y = jnp.where(row < lens_ref[b], y, 0.0)
    o_ref[...] = y.astype(o_ref.dtype)


def text_encoder_pallas(x_bf16, tokens_lens_i32, w1, b1, w2, b2, tm):
    B, Sp, Ein = x_bf16.shape
    Hp = w1.shape[1]
    Eout = w2.shape[1]
    return pl.pallas_call(
        _text_encoder_kernel,
        out_shape=jax.ShapeDtypeStruct((B, Sp, Eout), jnp.bfloat16),
        grid_spec=pltpu.PrefetchScalarGridSpec(
            num_scalar_prefetch=1,
            grid=(B, Sp // tm),
            in_specs=[
                pl.BlockSpec((pl.Squeezed(), tm, Ein), lambda b, s, lens: (b, s, 0)),
                pl.BlockSpec((Ein, Hp), lambda b, s, lens: (0, 0)),
                pl.BlockSpec((1, Hp), lambda b, s, lens: (0, 0)),
                pl.BlockSpec((Hp, Eout), lambda b, s, lens: (0, 0)),
                pl.BlockSpec((1, Eout), lambda b, s, lens: (0, 0)),
            ],
            out_specs=pl.BlockSpec((pl.Squeezed(), tm, Eout),
                                   lambda b, s, lens: (b, s, 0)),
        ),
        compiler_params=pltpu.CompilerParams(
            dimension_semantics=("parallel", "parallel"),
            vmem_limit_bytes=VMEM_LIMIT),
    )(tokens_lens_i32, x_bf16, w1, b1, w2, b2)


# ----------------------------------------------------------------------------------
# Pallas kernel 2: fm-decoder MLP with the Euler ODE loop fused in-kernel.
#   h0 = cond @ w1c                                  (step-invariant, one dot)
#   per step s:  h = h0 + x @ w1x + cond_bias[b, s]  (cond_bias = [t,g]@wc + b1)
#                v = gelu(h) @ w2 + b2
#                x = x + dt[b, s] * v                (dt scalar from SMEM)
#   final:       out = where(row_valid, x, x0)       (padded frames keep noise)
# ----------------------------------------------------------------------------------
def _make_fm_euler_kernel(num_step, unroll):
    def kernel(lens_ref, x0_ref, cond_ref, cb_ref, dt_ref,
               w1x_ref, w1c_ref, w2_ref, b2_ref, o_ref):
        b = pl.program_id(0)
        tt = pl.program_id(1)
        tm, fp = x0_ref.shape

        # step-invariant first-layer contribution from the packed [text|speech] cond
        h0 = jnp.dot(cond_ref[...], w1c_ref[...], preferred_element_type=jnp.float32)

        # (tm, 1) row-validity mask rebuilt from the SMEM length
        row = tt * tm + jax.lax.broadcasted_iota(jnp.int32, (tm, 1), 0)
        valid = row < lens_ref[b]

        w1x = w1x_ref[...]
        w2 = w2_ref[...]
        b2 = b2_ref[...]
        x0 = x0_ref[...].astype(jnp.float32)   # Euler state stays f32 in-kernel
        x = x0

        if unroll:
            cb = cb_ref[...]                    # (num_step, Hp) f32
            for s in range(num_step):           # static, small -> unrolled
                h = h0 + jnp.dot(x.astype(jnp.bfloat16), w1x,
                                 preferred_element_type=jnp.float32)
                h = jax.nn.gelu(h + cb[s:s + 1, :])
                v = jnp.dot(h.astype(jnp.bfloat16), w2,
                            preferred_element_type=jnp.float32) + b2
                x = x + dt_ref[b, s] * v
        else:
            def body(s, x):
                h = h0 + jnp.dot(x.astype(jnp.bfloat16), w1x,
                                 preferred_element_type=jnp.float32)
                h = jax.nn.gelu(h + cb_ref[pl.ds(s, 1), :])
                v = jnp.dot(h.astype(jnp.bfloat16), w2,
                            preferred_element_type=jnp.float32) + b2
                return x + dt_ref[b, s] * v
            x = jax.lax.fori_loop(0, num_step, body, x)

        # Padded frames never receive velocity -> they keep the input noise.
        o_ref[...] = jnp.where(valid, x, x0)
    return kernel


def fm_euler_pallas(noise_p, cond_p, cb, dt, lens_i32,
                    w1x, w1c, w2, b2, num_step, tm):
    B, Tp, Fp = noise_p.shape
    Cp = cond_p.shape[-1]
    Hp = w1x.shape[1]
    unroll = num_step <= 8
    return pl.pallas_call(
        _make_fm_euler_kernel(num_step, unroll),
        out_shape=jax.ShapeDtypeStruct((B, Tp, Fp), jnp.float32),
        grid_spec=pltpu.PrefetchScalarGridSpec(
            num_scalar_prefetch=1,
            grid=(B, Tp // tm),
            in_specs=[
                pl.BlockSpec((pl.Squeezed(), tm, Fp), lambda b, t, lens: (b, t, 0)),
                pl.BlockSpec((pl.Squeezed(), tm, Cp), lambda b, t, lens: (b, t, 0)),
                pl.BlockSpec((pl.Squeezed(), num_step, Hp),
                             lambda b, t, lens: (b, 0, 0)),
                pl.BlockSpec(memory_space=pltpu.MemorySpace.SMEM),   # dt (B,num_step)
                pl.BlockSpec((Fp, Hp), lambda b, t, lens: (0, 0)),
                pl.BlockSpec((Cp, Hp), lambda b, t, lens: (0, 0)),
                pl.BlockSpec((Hp, Fp), lambda b, t, lens: (0, 0)),
                pl.BlockSpec((1, Fp), lambda b, t, lens: (0, 0)),
            ],
            out_specs=pl.BlockSpec((pl.Squeezed(), tm, Fp),
                                   lambda b, t, lens: (b, t, 0)),
        ),
        compiler_params=pltpu.CompilerParams(
            dimension_semantics=("parallel", "parallel"),
            vmem_limit_bytes=VMEM_LIMIT),
    )(lens_i32, noise_p, cond_p, cb, dt, w1x, w1c, w2, b2)


# ----------------------------------------------------------------------------------
# host-side helpers mirroring zipvoice utilities
# ----------------------------------------------------------------------------------
def pad_labels(tokens, pad_id):
    B = len(tokens)
    S = max(len(t) for t in tokens)
    out = np.full((B, S), pad_id, dtype=np.int32)
    for b, t in enumerate(tokens):
        out[b, : len(t)] = np.asarray(t, dtype=np.int32)
    return jnp.asarray(out)


def tokens_index_from_durations(features_lens, tokens_lens, num_frames):
    """prepare_avg_tokens_durations + get_tokens_index (host-side, indices only)."""
    B = len(tokens_lens)
    idx = np.zeros((B, num_frames), dtype=np.int32)
    for b in range(B):
        tl = int(tokens_lens[b])
        fl = int(features_lens[b])
        avg = fl // tl
        durs = [avg] * tl
        durs[-1] = fl - avg * (tl - 1)
        cur = 0
        for i, d in enumerate(durs):
            idx[b, cur: cur + d] = i
            cur += d
        idx[b, cur:] = tl - 1   # padded frames (masked downstream)
    return jnp.asarray(idx)


# ----------------------------------------------------------------------------------
# Model
# ----------------------------------------------------------------------------------
class DistillTTSModelTrainWrapper:
    def __init__(self, key, vocab_size=10, text_embed_dim=32, feat_dim=16,
                 hidden_dim=64, pad_id=0, t_shift=1.0):
        self.vocab_size = vocab_size
        self.text_embed_dim = text_embed_dim
        self.feat_dim = feat_dim
        self.hidden_dim = hidden_dim
        self.pad_id = pad_id
        self.t_shift = float(t_shift)
        self.distill = True

        E, F, H = text_embed_dim, feat_dim, hidden_dim
        self.Ep = _round_up(E, LANE)
        self.Fp = _round_up(F, LANE)
        self.Hp = _round_up(H, LANE)
        self.Cp = _round_up(E + F, LANE)   # packed [text|speech] condition lanes

        keys = jax.random.split(key, 8)

        def init(k, shape, fan_in):
            return jax.random.normal(k, shape, jnp.float32) / np.sqrt(fan_in)

        def pad2(w, r, c):
            return jnp.pad(w, ((0, r - w.shape[0]), (0, c - w.shape[1])))

        # token embedding, columns padded to lane width
        self.embed_table = pad2(init(keys[0], (vocab_size, E), E),
                                vocab_size, self.Ep)
        # text encoder MLP (bf16 weights, zero-padded to lane-aligned shapes)
        self.te_w1 = pad2(init(keys[1], (E, H), E), self.Ep, self.Hp).astype(jnp.bfloat16)
        self.te_b1 = jnp.zeros((1, self.Hp), jnp.float32)
        self.te_w2 = pad2(init(keys[2], (H, E), H), self.Hp, self.Ep).astype(jnp.bfloat16)
        self.te_b2 = jnp.zeros((1, self.Ep), jnp.float32)

        # fm decoder MLP; first layer split into x slice + packed-condition slice
        Din_fm = F + E + F
        w1x = init(keys[3], (F, H), Din_fm)
        w1t = init(keys[4], (E, H), Din_fm)
        w1s = init(keys[5], (F, H), Din_fm)
        self.fm_w1x = pad2(w1x, self.Fp, self.Hp).astype(jnp.bfloat16)
        self.fm_w1c = pad2(jnp.concatenate([w1t, w1s], axis=0),
                           self.Cp, self.Hp).astype(jnp.bfloat16)
        self.fm_b1 = jnp.zeros((1, self.Hp), jnp.float32)
        self.fm_wc = jnp.pad(init(keys[6], (2, H), 2), ((0, 0), (0, self.Hp - H)))
        self.fm_w2 = pad2(init(keys[7], (H, F), H), self.Hp, self.Fp).astype(jnp.bfloat16)
        self.fm_b2 = jnp.zeros((1, self.Fp), jnp.float32)

        self._jit_core = jax.jit(self._core_forward, static_argnames=("num_step",))

    # -------------------- jitted numeric core --------------------
    def _core_forward(self, tokens_padded, tokens_lens, tokens_index,
                      features, features_lens, noise, speech_condition_mask,
                      t_start, t_end, guidance_scale, num_step):
        B, S = tokens_padded.shape
        _, NF, F = features.shape
        E = self.text_embed_dim
        Ep, Fp, Hp, Cp = self.Ep, self.Fp, self.Hp, self.Cp
        want_tiles = 2 if B == 1 else 1

        # ---- text encoder (Pallas) ----
        tm_s = _row_tile(S, want_tiles)
        Sp = _round_up(S, tm_s)
        emb = jnp.take(self.embed_table, tokens_padded, axis=0)        # (B, S, Ep)
        emb = jnp.pad(emb, ((0, 0), (0, Sp - S), (0, 0))).astype(jnp.bfloat16)
        te_out = text_encoder_pallas(emb, tokens_lens.astype(jnp.int32),
                                     self.te_w1, self.te_b1,
                                     self.te_w2, self.te_b2, tm_s)      # (B,Sp,Ep) bf16

        # ---- duration-based upsample (gather) to frame rate, real channels only ----
        tc = jnp.take_along_axis(te_out[:, :S, :E],
                                 tokens_index[:, :, None], axis=1)      # (B,NF,E) bf16

        # ---- speech condition (real channels) ----
        sc = jnp.where(speech_condition_mask[:, :, None], 0.0,
                       features).astype(jnp.bfloat16)                   # (B,NF,F)

        # ---- pack [text | speech] into ONE lane-dense bf16 stream, pad once ----
        tm_t = _row_tile(NF, want_tiles)
        Tp = _round_up(NF, tm_t)
        cond = jnp.concatenate([tc, sc], axis=-1)                       # (B,NF,E+F)
        cond_p = jnp.pad(cond, ((0, 0), (0, Tp - NF), (0, Cp - (E + F))))
        noise_p = jnp.pad(noise.astype(jnp.bfloat16),
                          ((0, 0), (0, Tp - NF), (0, Fp - F)))          # bf16 input

        # ---- Euler schedule + per-step conditioning bias (tiny, done in XLA) ----
        ts = jnp.reshape(t_start, (B,)).astype(jnp.float32)
        te = jnp.reshape(t_end, (B,)).astype(jnp.float32)
        g = jnp.reshape(guidance_scale, (B,)).astype(jnp.float32)
        sidx = jnp.arange(num_step, dtype=jnp.float32)

        def shift(t):
            return self.t_shift * t / (1.0 + (self.t_shift - 1.0) * t)

        t_cur = shift(ts[:, None] + (te - ts)[:, None] * (sidx[None, :] / num_step))
        t_nxt = shift(ts[:, None] + (te - ts)[:, None] * ((sidx[None, :] + 1.0) / num_step))
        dt = (t_nxt - t_cur).astype(jnp.float32)                        # (B,num_step) SMEM
        cond_tg = jnp.stack([t_cur, jnp.broadcast_to(g[:, None], t_cur.shape)], axis=-1)
        cb = jnp.einsum("bsc,ch->bsh", cond_tg, self.fm_wc) + self.fm_b1  # (B,num_step,Hp)

        lens_i32 = features_lens.astype(jnp.int32)

        # ---- fused Euler solve (Pallas) ----
        x = fm_euler_pallas(noise_p, cond_p, cb, dt, lens_i32,
                            self.fm_w1x, self.fm_w1c,
                            self.fm_w2, self.fm_b2, num_step, tm_t)
        x_t_end = x[:, :NF, :F]
        padding_mask = jnp.arange(NF)[None, :] >= lens_i32[:, None]
        x_t_end_lens = jnp.sum(~padding_mask, axis=-1).astype(jnp.int32)
        return x_t_end, x_t_end_lens

    # -------------------- public forward (== sample_intermediate) --------------------
    def forward(self, tokens, features, features_lens, noise,
                speech_condition_mask, t_start, t_end, num_step=1,
                guidance_scale=None):
        B, NF, _ = features.shape
        tokens_lens = np.array([len(t) for t in tokens], dtype=np.int32)
        tokens_padded = pad_labels(tokens, self.pad_id)
        tokens_index = tokens_index_from_durations(np.asarray(features_lens),
                                                   tokens_lens, NF)

        def norm(v, default=0.0):
            if v is None:
                return jnp.full((B,), default, jnp.float32)
            v = jnp.asarray(v, jnp.float32).reshape(-1)
            if v.shape[0] == 1 and B > 1:
                v = jnp.broadcast_to(v, (B,))
            return v

        return self._jit_core(
            tokens_padded, jnp.asarray(tokens_lens), tokens_index,
            jnp.asarray(features, jnp.float32),
            jnp.asarray(np.asarray(features_lens), jnp.int32),
            jnp.asarray(noise, jnp.float32),
            jnp.asarray(speech_condition_mask),
            norm(t_start), norm(t_end), norm(guidance_scale),
            num_step=int(num_step))

    __call__ = forward


# ----------------------------------------------------------------------------------
if __name__ == "__main__":
    key = jax.random.PRNGKey(0)
    k_model, k_feat, k_noise = jax.random.split(key, 3)

    B, T, F, E, V = 2, 16, 16, 32, 10
    model = DistillTTSModelTrainWrapper(k_model, vocab_size=V, text_embed_dim=E,
                                        feat_dim=F, hidden_dim=64, pad_id=0)

    tokens = [[1, 2, 3, 4, 5], [6, 7, 8]]
    features_lens = np.array([16, 12], dtype=np.int64)
    features = jax.random.normal(k_feat, (B, T, F), jnp.float32)
    noise = jax.random.normal(k_noise, (B, T, F), jnp.float32)

    # True = non-condition (masked) positions inside the valid range.
    frame_idx = np.arange(T)
    speech_condition_mask = jnp.asarray(
        (frame_idx[None, :] >= 4) & (frame_idx[None, :] < features_lens[:, None]))

    t_start = jnp.full((B, 1, 1), 0.0, jnp.float32)
    t_end = jnp.full((B, 1, 1), 1.0, jnp.float32)
    guidance_scale = jnp.full((B, 1, 1), 0.5, jnp.float32)

    x_t_end, x_t_end_lens = model.forward(
        tokens=tokens, features=features, features_lens=features_lens,
        noise=noise, speech_condition_mask=speech_condition_mask,
        t_start=t_start, t_end=t_end, num_step=2, guidance_scale=guidance_scale)

    jax.block_until_ready(x_t_end)
    jax.block_until_ready(x_t_end_lens)
    assert x_t_end.shape == (B, T, F)
    assert x_t_end_lens.shape == (B,)
    assert bool(jnp.all(jnp.isfinite(x_t_end)))
    print("KERNEL_OK")
</pallas_src>

<mosaic_0001>
module attributes {stable_mosaic.version = 11 : i64} {
  func.func @_text_encoder_kernel(%arg0: i32, %arg1: i32, %arg2: memref<2xi32, #tpu.memory_space<smem>>, %arg3: memref<1x8x128xbf16, #tpu.memory_space<vmem>>, %arg4: memref<128x128xbf16, #tpu.memory_space<vmem>>, %arg5: memref<1x128xf32, #tpu.memory_space<vmem>>, %arg6: memref<128x128xbf16, #tpu.memory_space<vmem>>, %arg7: memref<1x128xf32, #tpu.memory_space<vmem>>, %arg8: memref<1x8x128xbf16, #tpu.memory_space<vmem>>) attributes {dimension_semantics = [#tpu.dimension_semantics<parallel>, #tpu.dimension_semantics<parallel>], iteration_bounds = array<i64: 2, 1>, scalar_prefetch = 1 : i64, scratch_operands = 0 : i64, tpu.core_type = #tpu.core_type<tc>, window_params = [{transform_indices = @transform_0, window_bounds = array<i64: 1, 8, 128>}, {pipeline_mode = #tpu.pipeline_mode<synchronous>, transform_indices = @transform_1, window_bounds = array<i64: 128, 128>}, {pipeline_mode = #tpu.pipeline_mode<synchronous>, transform_indices = @transform_2, window_bounds = array<i64: 1, 128>}, {pipeline_mode = #tpu.pipeline_mode<synchronous>, transform_indices = @transform_3, window_bounds = array<i64: 128, 128>}, {pipeline_mode = #tpu.pipeline_mode<synchronous>, transform_indices = @transform_4, window_bounds = array<i64: 1, 128>}, {transform_indices = @transform_5, window_bounds = array<i64: 1, 8, 128>}]} {
    %c0 = arith.constant 0 : index
    %c0_0 = arith.constant 0 : index
    %c0_1 = arith.constant 0 : index
    %0 = vector.load %arg3[%c0, %c0_0, %c0_1] : memref<1x8x128xbf16, #tpu.memory_space<vmem>>, vector<1x8x128xbf16>
    %1 = vector.shape_cast %0 : vector<1x8x128xbf16> to vector<8x128xbf16>
    %c0_2 = arith.constant 0 : index
    %c0_3 = arith.constant 0 : index
    %2 = vector.load %arg4[%c0_2, %c0_3] : memref<128x128xbf16, #tpu.memory_space<vmem>>, vector<128x128xbf16>
    %cst = arith.constant dense<0.000000e+00> : vector<8x128xf32>
    %3 = tpu.matmul %1, %2, %cst {dimension_numbers = #tpu.dot_dimension_numbers<[1], [0], [0], [1], [0, 0, 1, 1], [], []>} : vector<8x128xbf16>, vector<128x128xbf16>, vector<8x128xf32> -> vector<8x128xf32>
    %c0_4 = arith.constant 0 : index
    %c0_5 = arith.constant 0 : index
    %4 = vector.load %arg5[%c0_4, %c0_5] : memref<1x128xf32, #tpu.memory_space<vmem>>, vector<1x128xf32>
    %5 = vector.broadcast %4 : vector<1x128xf32> to vector<8x128xf32>
    %6 = arith.addf %3, %5 : vector<8x128xf32>
    %7 = arith.mulf %6, %6 : vector<8x128xf32>
    %8 = arith.mulf %6, %7 : vector<8x128xf32>
    %cst_6 = arith.constant 4.471500e-02 : f32
    %9 = vector.broadcast %cst_6 : f32 to vector<8x128xf32>
    %10 = arith.mulf %9, %8 : vector<8x128xf32>
    %11 = arith.addf %6, %10 : vector<8x128xf32>
    %cst_7 = arith.constant 0.797884583 : f32
    %12 = vector.broadcast %cst_7 : f32 to vector<8x128xf32>
    %13 = arith.mulf %12, %11 : vector<8x128xf32>
    %14 = math.tanh %13 : vector<8x128xf32>
    %cst_8 = arith.constant 1.000000e+00 : f32
    %15 = vector.broadcast %cst_8 : f32 to vector<8x128xf32>
    %16 = arith.addf %15, %14 : vector<8x128xf32>
    %cst_9 = arith.constant 5.000000e-01 : f32
    %17 = vector.broadcast %cst_9 : f32 to vector<8x128xf32>
    %18 = arith.mulf %17, %16 : vector<8x128xf32>
    %19 = arith.mulf %6, %18 : vector<8x128xf32>
    %20 = arith.truncf %19 : vector<8x128xf32> to vector<8x128xbf16>
    %c0_10 = arith.constant 0 : index
    %c0_11 = arith.constant 0 : index
    %21 = vector.load %arg6[%c0_10, %c0_11] : memref<128x128xbf16, #tpu.memory_space<vmem>>, vector<128x128xbf16>
    %cst_12 = arith.constant dense<0.000000e+00> : vector<8x128xf32>
    %22 = tpu.matmul %20, %21, %cst_12 {dimension_numbers = #tpu.dot_dimension_numbers<[1], [0], [0], [1], [0, 0, 1, 1], [], []>} : vector<8x128xbf16>, vector<128x128xbf16>, vector<8x128xf32> -> vector<8x128xf32>
    %c0_13 = arith.constant 0 : index
    %c0_14 = arith.constant 0 : index
    %23 = vector.load %arg7[%c0_13, %c0_14] : memref<1x128xf32, #tpu.memory_space<vmem>>, vector<1x128xf32>
    %24 = vector.broadcast %23 : vector<1x128xf32> to vector<8x128xf32>
    %25 = arith.addf %22, %24 : vector<8x128xf32>
    %c8_i32 = arith.constant 8 : i32
    %26 = arith.muli %arg1, %c8_i32 : i32
    %27 = tpu.iota {dimensions = array<i32: 0>} : vector<8x1xi32>
    %28 = vector.broadcast %26 : i32 to vector<8x1xi32>
    %29 = arith.addi %28, %27 : vector<8x1xi32>
    %30 = arith.index_cast %arg0 : i32 to index
    %31 = memref.load %arg2[%30] : memref<2xi32, #tpu.memory_space<smem>>
    %32 = vector.broadcast %31 : i32 to vector<8x1xi32>
    %33 = arith.cmpi slt, %29, %32 : vector<8x1xi32>
    %cst_15 = arith.constant 0.000000e+00 : f32
    %34 = vector.shape_cast %33 : vector<8x1xi1> to vector<8x1xi1>
    %35 = vector.broadcast %34 : vector<8x1xi1> to vector<8x128xi1>
    %36 = vector.broadcast %cst_15 : f32 to vector<8x128xf32>
    %37 = arith.select %35, %25, %36 : vector<8x128xi1>, vector<8x128xf32>
    %38 = arith.truncf %37 : vector<8x128xf32> to vector<8x128xbf16>
    %c0_16 = arith.constant 0 : index
    %c0_17 = arith.constant 0 : index
    %c0_18 = arith.constant 0 : index
    %39 = vector.load %arg8[%c0_16, %c0_17, %c0_18] : memref<1x8x128xbf16, #tpu.memory_space<vmem>>, vector<1x8x128xbf16>
    %40 = vector.shape_cast %39 : vector<1x8x128xbf16> to vector<8x128xbf16>
    %41 = vector.shape_cast %38 : vector<8x128xbf16> to vector<1x8x128xbf16>
    tpu.vector_store %arg8[%c0_16, %c0_17, %c0_18], %41 {strides = array<i32>} : memref<1x8x128xbf16, #tpu.memory_space<vmem>>, vector<1x8x128xbf16>,
    return
  }
  func.func @transform_0(%arg0: i32, %arg1: i32, %arg2: memref<2xi32, #tpu.memory_space<smem>>) -> (i32, i32, i32) {
    %c0_i32 = arith.constant 0 : i32
    %c0_i32_0 = arith.constant 0 : i32
    return %arg0, %arg1, %c0_i32 : i32, i32, i32
  }
  func.func @transform_1(%arg0: i32, %arg1: i32, %arg2: memref<2xi32, #tpu.memory_space<smem>>) -> (i32, i32) {
    %c0_i32 = arith.constant 0 : i32
    %c0_i32_0 = arith.constant 0 : i32
    %c0_i32_1 = arith.constant 0 : i32
    return %c0_i32, %c0_i32_0 : i32, i32
  }
  func.func @transform_2(%arg0: i32, %arg1: i32, %arg2: memref<2xi32, #tpu.memory_space<smem>>) -> (i32, i32) {
    %c0_i32 = arith.constant 0 : i32
    %c0_i32_0 = arith.constant 0 : i32
    %c0_i32_1 = arith.constant 0 : i32
    return %c0_i32, %c0_i32_0 : i32, i32
  }
  func.func @transform_3(%arg0: i32, %arg1: i32, %arg2: memref<2xi32, #tpu.memory_space<smem>>) -> (i32, i32) {
    %c0_i32 = arith.constant 0 : i32
    %c0_i32_0 = arith.constant 0 : i32
    %c0_i32_1 = arith.constant 0 : i32
    return %c0_i32, %c0_i32_0 : i32, i32
  }
  func.func @transform_4(%arg0: i32, %arg1: i32, %arg2: memref<2xi32, #tpu.memory_space<smem>>) -> (i32, i32) {
    %c0_i32 = arith.constant 0 : i32
    %c0_i32_0 = arith.constant 0 : i32
    %c0_i32_1 = arith.constant 0 : i32
    return %c0_i32, %c0_i32_0 : i32, i32
  }
  func.func @transform_5(%arg0: i32, %arg1: i32, %arg2: memref<2xi32, #tpu.memory_space<smem>>) -> (i32, i32, i32) {
    %c0_i32 = arith.constant 0 : i32
    %c0_i32_0 = arith.constant 0 : i32
    return %arg0, %arg1, %c0_i32 : i32, i32, i32
  }
}

module attributes {stable_mosaic.version = 11 : i64} {
  func.func @kernel(%arg0: i32, %arg1: i32, %arg2: memref<2xi32, #tpu.memory_space<smem>>, %arg3: memref<1x16x128xbf16, #tpu.memory_space<vmem>>, %arg4: memref<1x16x128xbf16, #tpu.memory_space<vmem>>, %arg5: memref<1x2x128xf32, #tpu.memory_space<vmem>>, %arg6: memref<2x2xf32, #tpu.memory_space<smem>>, %arg7: memref<128x128xbf16, #tpu.memory_space<vmem>>, %arg8: memref<128x128xbf16, #tpu.memory_space<vmem>>, %arg9: memref<128x128xbf16, #tpu.memory_space<vmem>>, %arg10: memref<1x128xf32, #tpu.memory_space<vmem>>, %arg11: memref<1x16x128xf32, #tpu.memory_space<vmem>>) attributes {dimension_semantics = [#tpu.dimension_semantics<parallel>, #tpu.dimension_semantics<parallel>], iteration_bounds = array<i64: 2, 1>, scalar_prefetch = 1 : i64, scratch_operands = 0 : i64, tpu.core_type = #tpu.core_type<tc>, window_params = [{transform_indices = @transform_0, window_bounds = array<i64: 1, 16, 128>}, {transform_indices = @transform_1, window_bounds = array<i64: 1, 16, 128>}, {transform_indices = @transform_2, window_bounds = array<i64: 1, 2, 128>}, {transform_indices = @transform_3, window_bounds = array<i64: 2, 2>}, {pipeline_mode = #tpu.pipeline_mode<synchronous>, transform_indices = @transform_4, window_bounds = array<i64: 128, 128>}, {pipeline_mode = #tpu.pipeline_mode<synchronous>, transform_indices = @transform_5, window_bounds = array<i64: 128, 128>}, {pipeline_mode = #tpu.pipeline_mode<synchronous>, transform_indices = @transform_6, window_bounds = array<i64: 128, 128>}, {pipeline_mode = #tpu.pipeline_mode<synchronous>, transform_indices = @transform_7, window_bounds = array<i64: 1, 128>}, {transform_indices = @transform_8, window_bounds = array<i64: 1, 16, 128>}]} {
    %c0 = arith.constant 0 : index
    %c0_0 = arith.constant 0 : index
    %c0_1 = arith.constant 0 : index
    %0 = vector.load %arg4[%c0, %c0_0, %c0_1] : memref<1x16x128xbf16, #tpu.memory_space<vmem>>, vector<1x16x128xbf16>
    %1 = vector.shape_cast %0 : vector<1x16x128xbf16> to vector<16x128xbf16>
    %c0_2 = arith.constant 0 : index
    %c0_3 = arith.constant 0 : index
    %2 = vector.load %arg8[%c0_2, %c0_3] : memref<128x128xbf16, #tpu.memory_space<vmem>>, vector<128x128xbf16>
    %cst = arith.constant dense<0.000000e+00> : vector<16x128xf32>
    %3 = tpu.matmul %1, %2, %cst {dimension_numbers = #tpu.dot_dimension_numbers<[1], [0], [0], [1], [0, 0, 1, 1], [], []>} : vector<16x128xbf16>, vector<128x128xbf16>, vector<16x128xf32> -> vector<16x128xf32>
    %c16_i32 = arith.constant 16 : i32
    %4 = arith.muli %arg1, %c16_i32 : i32
    %5 = tpu.iota {dimensions = array<i32: 0>} : vector<16x1xi32>
    %6 = vector.broadcast %4 : i32 to vector<16x1xi32>
    %7 = arith.addi %6, %5 : vector<16x1xi32>
    %8 = arith.index_cast %arg0 : i32 to index
    %9 = memref.load %arg2[%8] : memref<2xi32, #tpu.memory_space<smem>>
    %10 = vector.broadcast %9 : i32 to vector<16x1xi32>
    %11 = arith.cmpi slt, %7, %10 : vector<16x1xi32>
    %c0_4 = arith.constant 0 : index
    %c0_5 = arith.constant 0 : index
    %12 = vector.load %arg7[%c0_4, %c0_5] : memref<128x128xbf16, #tpu.memory_space<vmem>>, vector<128x128xbf16>
    %c0_6 = arith.constant 0 : index
    %c0_7 = arith.constant 0 : index
    %13 = vector.load %arg9[%c0_6, %c0_7] : memref<128x128xbf16, #tpu.memory_space<vmem>>, vector<128x128xbf16>
    %c0_8 = arith.constant 0 : index
    %c0_9 = arith.constant 0 : index
    %14 = vector.load %arg10[%c0_8, %c0_9] : memref<1x128xf32, #tpu.memory_space<vmem>>, vector<1x128xf32>
    %c0_10 = arith.constant 0 : index
    %c0_11 = arith.constant 0 : index
    %c0_12 = arith.constant 0 : index
    %15 = vector.load %arg3[%c0_10, %c0_11, %c0_12] : memref<1x16x128xbf16, #tpu.memory_space<vmem>>, vector<1x16x128xbf16>
    %16 = vector.shape_cast %15 : vector<1x16x128xbf16> to vector<16x128xbf16>
    %17 = arith.extf %16 : vector<16x128xbf16> to vector<16x128xf32>
    %c0_13 = arith.constant 0 : index
    %c0_14 = arith.constant 0 : index
    %c0_15 = arith.constant 0 : index
    %18 = vector.load %arg5[%c0_13, %c0_14, %c0_15] : memref<1x2x128xf32, #tpu.memory_space<vmem>>, vector<1x2x128xf32>
    %19 = vector.shape_cast %18 : vector<1x2x128xf32> to vector<2x128xf32>
    %20 = arith.truncf %17 : vector<16x128xf32> to vector<16x128xbf16>
    %cst_16 = arith.constant dense<0.000000e+00> : vector<16x128xf32>
    %21 = tpu.matmul %20, %12, %cst_16 {dimension_numbers = #tpu.dot_dimension_numbers<[1], [0], [0], [1], [0, 0, 1, 1], [], []>} : vector<16x128xbf16>, vector<128x128xbf16>, vector<16x128xf32> -> vector<16x128xf32>
    %22 = arith.addf %3, %21 : vector<16x128xf32>
    %23 = vector.extract_strided_slice %19 {offsets = [0, 0], sizes = [1, 128], strides = [1, 1]} : vector<2x128xf32> to vector<1x128xf32>
    %24 = vector.broadcast %23 : vector<1x128xf32> to vector<16x128xf32>
    %25 = arith.addf %22, %24 : vector<16x128xf32>
    %26 = arith.mulf %25, %25 : vector<16x128xf32>
    %27 = arith.mulf %25, %26 : vector<16x128xf32>
    %cst_17 = arith.constant 4.471500e-02 : f32
    %28 = vector.broadcast %cst_17 : f32 to vector<16x128xf32>
    %29 = arith.mulf %28, %27 : vector<16x128xf32>
    %30 = arith.addf %25, %29 : vector<16x128xf32>
    %cst_18 = arith.constant 0.797884583 : f32
    %31 = vector.broadcast %cst_18 : f32 to vector<16x128xf32>
    %32 = arith.mulf %31, %30 : vector<16x128xf32>
    %33 = math.tanh %32 : vector<16x128xf32>
    %cst_19 = arith.constant 1.000000e+00 : f32
    %34 = vector.broadcast %cst_19 : f32 to vector<16x128xf32>
    %35 = arith.addf %34, %33 : vector<16x128xf32>
    %cst_20 = arith.constant 5.000000e-01 : f32
    %36 = vector.broadcast %cst_20 : f32 to vector<16x128xf32>
    %37 = arith.mulf %36, %35 : vector<16x128xf32>
    %38 = arith.mulf %25, %37 : vector<16x128xf32>
    %39 = arith.truncf %38 : vector<16x128xf32> to vector<16x128xbf16>
    %cst_21 = arith.constant dense<0.000000e+00> : vector<16x128xf32>
    %40 = tpu.matmul %39, %13, %cst_21 {dimension_numbers = #tpu.dot_dimension_numbers<[1], [0], [0], [1], [0, 0, 1, 1], [], []>} : vector<16x128xbf16>, vector<128x128xbf16>, vector<16x128xf32> -> vector<16x128xf32>
    %41 = vector.broadcast %14 : vector<1x128xf32> to vector<16x128xf32>
    %42 = arith.addf %40, %41 : vector<16x128xf32>
    %43 = arith.index_cast %arg0 : i32 to index
    %c0_22 = arith.constant 0 : index
    %44 = memref.load %arg6[%43, %c0_22] : memref<2x2xf32, #tpu.memory_space<smem>>
    %45 = vector.broadcast %44 : f32 to vector<16x128xf32>
    %46 = arith.mulf %45, %42 : vector<16x128xf32>
    %47 = arith.addf %17, %46 : vector<16x128xf32>
    %48 = arith.truncf %47 : vector<16x128xf32> to vector<16x128xbf16>
    %cst_23 = arith.constant dense<0.000000e+00> : vector<16x128xf32>
    %49 = tpu.matmul %48, %12, %cst_23 {dimension_numbers = #tpu.dot_dimension_numbers<[1], [0], [0], [1], [0, 0, 1, 1], [], []>} : vector<16x128xbf16>, vector<128x128xbf16>, vector<16x128xf32> -> vector<16x128xf32>
    %50 = arith.addf %3, %49 : vector<16x128xf32>
    %51 = vector.extract_strided_slice %19 {offsets = [1, 0], sizes = [1, 128], strides = [1, 1]} : vector<2x128xf32> to vector<1x128xf32>
    %52 = vector.broadcast %51 : vector<1x128xf32> to vector<16x128xf32>
    %53 = arith.addf %50, %52 : vector<16x128xf32>
    %54 = arith.mulf %53, %53 : vector<16x128xf32>
    %55 = arith.mulf %53, %54 : vector<16x128xf32>
    %cst_24 = arith.constant 4.471500e-02 : f32
    %56 = vector.broadcast %cst_24 : f32 to vector<16x128xf32>
    %57 = arith.mulf %56, %55 : vector<16x128xf32>
    %58 = arith.addf %53, %57 : vector<16x128xf32>
    %cst_25 = arith.constant 0.797884583 : f32
    %59 = vector.broadcast %cst_25 : f32 to vector<16x128xf32>
    %60 = arith.mulf %59, %58 : vector<16x128xf32>
    %61 = math.tanh %60 : vector<16x128xf32>
    %cst_26 = arith.constant 1.000000e+00 : f32
    %62 = vector.broadcast %cst_26 : f32 to vector<16x128xf32>
    %63 = arith.addf %62, %61 : vector<16x128xf32>
    %cst_27 = arith.constant 5.000000e-01 : f32
    %64 = vector.broadcast %cst_27 : f32 to vector<16x128xf32>
    %65 = arith.mulf %64, %63 : vector<16x128xf32>
    %66 = arith.mulf %53, %65 : vector<16x128xf32>
    %67 = arith.truncf %66 : vector<16x128xf32> to vector<16x128xbf16>
    %cst_28 = arith.constant dense<0.000000e+00> : vector<16x128xf32>
    %68 = tpu.matmul %67, %13, %cst_28 {dimension_numbers = #tpu.dot_dimension_numbers<[1], [0], [0], [1], [0, 0, 1, 1], [], []>} : vector<16x128xbf16>, vector<128x128xbf16>, vector<16x128xf32> -> vector<16x128xf32>
    %69 = vector.broadcast %14 : vector<1x128xf32> to vector<16x128xf32>
    %70 = arith.addf %68, %69 : vector<16x128xf32>
    %71 = arith.index_cast %arg0 : i32 to index
    %c1 = arith.constant 1 : index
    %72 = memref.load %arg6[%71, %c1] : memref<2x2xf32, #tpu.memory_space<smem>>
    %73 = vector.broadcast %72 : f32 to vector<16x128xf32>
    %74 = arith.mulf %73, %70 : vector<16x128xf32>
    %75 = arith.addf %47, %74 : vector<16x128xf32>
    %76 = vector.shape_cast %11 : vector<16x1xi1> to vector<16x1xi1>
    %77 = vector.broadcast %76 : vector<16x1xi1> to vector<16x128xi1>
    %78 = arith.select %77, %75, %17 : vector<16x128xi1>, vector<16x128xf32>
    %c0_29 = arith.constant 0 : index
    %c0_30 = arith.constant 0 : index
    %c0_31 = arith.constant 0 : index
    %79 = vector.load %arg11[%c0_29, %c0_30, %c0_31] : memref<1x16x128xf32, #tpu.memory_space<vmem>>, vector<1x16x128xf32>
    %80 = vector.shape_cast %79 : vector<1x16x128xf32> to vector<16x128xf32>
    %81 = vector.shape_cast %78 : vector<16x128xf32> to vector<1x16x128xf32>
    tpu.vector_store %arg11[%c0_29, %c0_30, %c0_31], %81 {strides = array<i32>} : memref<1x16x128xf32, #tpu.memory_space<vmem>>, vector<1x16x128xf32>,
    return
  }
  func.func @transform_0(%arg0: i32, %arg1: i32, %arg2: memref<2xi32, #tpu.memory_space<smem>>) -> (i32, i32, i32) {
    %c0_i32 = arith.constant 0 : i32
    %c0_i32_0 = arith.constant 0 : i32
    return %arg0, %arg1, %c0_i32 : i32, i32, i32
  }
  func.func @transform_1(%arg0: i32, %arg1: i32, %arg2: memref<2xi32, #tpu.memory_space<smem>>) -> (i32, i32, i32) {
    %c0_i32 = arith.constant 0 : i32
    %c0_i32_0 = arith.constant 0 : i32
    return %arg0, %arg1, %c0_i32 : i32, i32, i32
  }
  func.func @transform_2(%arg0: i32, %arg1: i32, %arg2: memref<2xi32, #tpu.memory_space<smem>>) -> (i32, i32, i32) {
    %c0_i32 = arith.constant 0 : i32
    %c0_i32_0 = arith.constant 0 : i32
    %c0_i32_1 = arith.constant 0 : i32
    return %arg0, %c0_i32, %c0_i32_0 : i32, i32, i32
  }
  func.func @transform_3(%arg0: i32, %arg1: i32, %arg2: memref<2xi32, #tpu.memory_space<smem>>) -> (i32, i32) {
    %c0_i32 = arith.constant 0 : i32
    %c0_i32_0 = arith.constant 0 : i32
    %c0_i32_1 = arith.constant 0 : i32
    return %c0_i32, %c0_i32_0 : i32, i32
  }
  func.func @transform_4(%arg0: i32, %arg1: i32, %arg2: memref<2xi32, #tpu.memory_space<smem>>) -> (i32, i32) {
    %c0_i32 = arith.constant 0 : i32
    %c0_i32_0 = arith.constant 0 : i32
    %c0_i32_1 = arith.constant 0 : i32
    return %c0_i32, %c0_i32_0 : i32, i32
  }
  func.func @transform_5(%arg0: i32, %arg1: i32, %arg2: memref<2xi32, #tpu.memory_space<smem>>) -> (i32, i32) {
    %c0_i32 = arith.constant 0 : i32
    %c0_i32_0 = arith.constant 0 : i32
    %c0_i32_1 = arith.constant 0 : i32
    return %c0_i32, %c0_i32_0 : i32, i32
  }
  func.func @transform_6(%arg0: i32, %arg1: i32, %arg2: memref<2xi32, #tpu.memory_space<smem>>) -> (i32, i32) {
    %c0_i32 = arith.constant 0 : i32
    %c0_i32_0 = arith.constant 0 : i32
    %c0_i32_1 = arith.constant 0 : i32
    return %c0_i32, %c0_i32_0 : i32, i32
  }
  func.func @transform_7(%arg0: i32, %arg1: i32, %arg2: memref<2xi32, #tpu.memory_space<smem>>) -> (i32, i32) {
    %c0_i32 = arith.constant 0 : i32
    %c0_i32_0 = arith.constant 0 : i32
    %c0_i32_1 = arith.constant 0 : i32
    return %c0_i32, %c0_i32_0 : i32, i32
  }
  func.func @transform_8(%arg0: i32, %arg1: i32, %arg2: memref<2xi32, #tpu.memory_space<smem>>) -> (i32, i32, i32) {
    %c0_i32 = arith.constant 0 : i32
    %c0_i32_0 = arith.constant 0 : i32
    return %arg0, %arg1, %c0_i32 : i32, i32, i32
  }
}

</mosaic_0001>

<llo_original>
// kernel: sub.3
$region0: #{sub.3}
  #allocation0 [shape = 's32[1]{0}', space=sflag, size = 0x4, scoped, tag = 'scoped memory for sub.3']
  %s0 = inlined_call_operand.vmem [shape: f32[2], index: 0, kind: input, shape index: {}]
  %s1 = inlined_call_operand.vmem [shape: f32[2], index: 1, kind: input, shape index: {}]
  %s2 = inlined_call_operand.vmem [shape: f32[2], index: 2, kind: output, shape index: {}]
  %v3 = vld [vmem:[%s0] sm:$0x1]
  %v4 = vld [vmem:[%s1] sm:$0x1]
  %5 = xla_tuple %v3, %v4
  %6 = xla_tuple %5
  %v7 = vsub.f32 %v3, %v4
  %8 = xla_tuple %v7
  %9 = vst [vmem:[%s2] sm:$0x1] %v7

// kernel: _core_forward.2
$region0: #{_core_forward.2}
  #allocation0 [shape = 'u32[]', space=smem, size = 0x4, offset = 0x4, fixed_abs, tag = 'smem constant byte address 0x4 - core index']
  #allocation1 [shape = 'u32[144,128]{1,0:T(1,128)}', space=vmem, size = 0x12000, scoped, tag = 'internal scratch']
  #allocation2 [shape = 's32[1]{0}', space=sflag, size = 0x4, scoped, tag = 'scoped memory for _core_forward.2']
  #allocation3 [shape = 'u8[512]{0}', space=smem, size = 0x200, scoped, tag = 'prefetched SMEM operand 0']
  %s0 = inlined_call_operand.vmem [shape: s32[2], index: 0, kind: input, shape index: {}]
  %s1 = inlined_call_operand.vmem [shape: bf16[2,8,128], index: 1, kind: input, shape index: {}]
  %s2 = inlined_call_operand.vmem [shape: bf16[128,128], index: 2, kind: input, shape index: {}]
  %s3 = inlined_call_operand.vmem [shape: f32[1,128], index: 3, kind: input, shape index: {}, may-alias: {3,5}]
  %s4 = inlined_call_operand.vmem [shape: bf16[128,128], index: 4, kind: input, shape index: {}]
  %s5 = inlined_call_operand.vmem [shape: f32[1,128], index: 5, kind: input, shape index: {}, may-alias: {3,5}]
  %s6 = inlined_call_operand.vmem [shape: bf16[2,8,128], index: 6, kind: output, shape index: {}]
  %s7 = sld [smem:[#allocation0]]
  $region53: #{_core_forward.2} parent=0
    _
  %s9 = ssub.s32 1, %s7
  %s10 = scalar_select 0, %s9, %s7
  %s11 = sshll.u32 %s0, 4
  %s12 = int_to_ptr.vmem [resolvable:$true] %s11
  %14 = dma.vmem_to_smem %s12, 16, [#allocation3], [#allocation2]
  %15 = dma.done [#allocation2], 16
  %16 = sfence
  loop: start=0, step=1, limit=4
  $region2: #{_core_forward.2} parent=0 // loop_pre_header
    _
  $region3: #{_core_forward.2} parent=0 // loop_header
    %s18 = sphi 0, %s22
    %p19 = scmp.ge.s32.totalorder %s18, 4
    %s25 = sphi 0, %s37
    %s26 = sphi 0, %s33
    %s27 = sphi 0, %s25
    %s28 = sphi 0, %s26
    %s29 = sphi 0, %s27
    %s30 = sphi 0, %s28
    %s42 = sphi 0, %s44
    %s45 = sphi 0, %s42
    %s46 = sphi 0, %s45
    %s62 = sphi 0, %s46
    %s66 = sphi 0, %s66
    %s68 = sphi 0, %s66
    %s69 = sphi 0, %s68
    %s83 = sphi 0, %s69
    %s87 = sphi 0, %s87
    %s89 = sphi 0, %s87
    %s90 = sphi 0, %s89
    %s104 = sphi 0, %s90
    %s108 = sphi 0, %s108
    %s110 = sphi 0, %s108
    %s111 = sphi 0, %s110
    %s125 = sphi 0, %s111
    %s129 = sphi 0, %s129
    %s131 = sphi 0, %s129
    %s132 = sphi 0, %s131
    %s146 = sphi 0, %s132
    %s154 = sphi 0, %s156
    %s157 = sphi 0, %s154
    %s158 = sphi 0, %s157
    %s174 = sphi 0, %s158
  $region4: #{_core_forward.2} parent=0 // loop_header_branch
    %21 = sbr.rel (%p19) target = $region8
  $region5: #{_core_forward.2} parent=0 // loop_body
    %s23 = ssub.s32 %s18, 1
    %s24 = ssub.s32 %s18, 2
    %s31 = sadd.s32 1, %s26
    %p32 = scmp.ge.s32.totalorder %s31, 1
    %s33 = scalar_select %p32, 0, %s31
    %s34 = sadd.s32 1, %s25
    %s35 = scalar_select %p32, %s34, %s25
    %p36 = scmp.ge.s32.totalorder %s35, 2
    %s37 = scalar_select %p36, 0, %s35
    %s38 = ssub.s32 %s25, %s37
    %s39 = ssub.s32 %s26, %s33
    %s40 = sor.u32 %s38, %s39
    %p41 = scmp.eq.s32.totalorder %s40, 0
    %s43 = sadd.s32 %s42, 1
    %s44 = scalar_select %p41, %s42, %s43
    %p47 = pneg %p41
    %p48 = scmp.eq.s32.totalorder %s18, 1
    %p49 = por %p47, %p48
    %p50 = scmp.ne.s32.totalorder %s42, %s45
    %p51 = scmp.eq.s32.totalorder %s18, 0
    %p52 = por %p50, %p51
    %p53 = scmp.ne.s32.totalorder %s42, %s45
    %p54 = scmp.eq.s32.totalorder %s23, 1
    %p55 = por %p53, %p54
    %p56 = scmp.ne.s32.totalorder %s45, %s46
    %p57 = scmp.eq.s32.totalorder %s23, 0
    %p58 = por %p56, %p57
    %p59 = scmp.ne.s32.totalorder %s45, %s46
    %p60 = scmp.eq.s32.totalorder %s24, 1
    %p61 = por %p59, %p60
    %p63 = scmp.ne.s32.totalorder %s46, %s62
    %p64 = scmp.eq.s32.totalorder %s24, 0
    %p65 = por %p63, %p64
    %s67 = sadd.s32 %s66, 1
    %p70 = scmp.eq.s32.totalorder %s18, 1
    %p71 = scmp.ne.s32.totalorder %s66, %s68
    %p72 = scmp.eq.s32.totalorder %s18, 0
    %p73 = por %p71, %p72
    %p74 = scmp.ne.s32.totalorder %s66, %s68
    %p75 = scmp.eq.s32.totalorder %s23, 1
    %p76 = por %p74, %p75
    %p77 = scmp.ne.s32.totalorder %s68, %s69
    %p78 = scmp.eq.s32.totalorder %s23, 0
    %p79 = por %p77, %p78
    %p80 = scmp.ne.s32.totalorder %s68, %s69
    %p81 = scmp.eq.s32.totalorder %s24, 1
    %p82 = por %p80, %p81
    %p84 = scmp.ne.s32.totalorder %s69, %s83
    %p85 = scmp.eq.s32.totalorder %s24, 0
    %p86 = por %p84, %p85
    %s88 = sadd.s32 %s87, 1
    %p91 = scmp.eq.s32.totalorder %s18, 1
    %p92 = scmp.ne.s32.totalorder %s87, %s89
    %p93 = scmp.eq.s32.totalorder %s18, 0
    %p94 = por %p92, %p93
    %p95 = scmp.ne.s32.totalorder %s87, %s89
    %p96 = scmp.eq.s32.totalorder %s23, 1
    %p97 = por %p95, %p96
    %p98 = scmp.ne.s32.totalorder %s89, %s90
    %p99 = scmp.eq.s32.totalorder %s23, 0
    %p100 = por %p98, %p99
    %p101 = scmp.ne.s32.totalorder %s89, %s90
    %p102 = scmp.eq.s32.totalorder %s24, 1
    %p103 = por %p101, %p102
    %p105 = scmp.ne.s32.totalorder %s90, %s104
    %p106 = scmp.eq.s32.totalorder %s24, 0
    %p107 = por %p105, %p106
    %s109 = sadd.s32 %s108, 1
    %p112 = scmp.eq.s32.totalorder %s18, 1
    %p113 = scmp.ne.s32.totalorder %s108, %s110
    %p114 = scmp.eq.s32.totalorder %s18, 0
    %p115 = por %p113, %p114
    %p116 = scmp.ne.s32.totalorder %s108, %s110
    %p117 = scmp.eq.s32.totalorder %s23, 1
    %p118 = por %p116, %p117
    %p119 = scmp.ne.s32.totalorder %s110, %s111
    %p120 = scmp.eq.s32.totalorder %s23, 0
    %p121 = por %p119, %p120
    %p122 = scmp.ne.s32.totalorder %s110, %s111
    %p123 = scmp.eq.s32.totalorder %s24, 1
    %p124 = por %p122, %p123
    %p126 = scmp.ne.s32.totalorder %s111, %s125
    %p127 = scmp.eq.s32.totalorder %s24, 0
    %p128 = por %p126, %p127
    %s130 = sadd.s32 %s129, 1
    %p133 = scmp.eq.s32.totalorder %s18, 1
    %p134 = scmp.ne.s32.totalorder %s129, %s131
    %p135 = scmp.eq.s32.totalorder %s18, 0
    %p136 = por %p134, %p135
    %p137 = scmp.ne.s32.totalorder %s129, %s131
    %p138 = scmp.eq.s32.totalorder %s23, 1
    %p139 = por %p137, %p138
    %p140 = scmp.ne.s32.totalorder %s131, %s132
    %p141 = scmp.eq.s32.totalorder %s23, 0
    %p142 = por %p140, %p141
    %p143 = scmp.ne.s32.totalorder %s131, %s132
    %p144 = scmp.eq.s32.totalorder %s24, 1
    %p145 = por %p143, %p144
    %p147 = scmp.ne.s32.totalorder %s132, %s146
    %p148 = scmp.eq.s32.totalorder %s24, 0
    %p149 = por %p147, %p148
    %s150 = ssub.s32 %s25, %s37
    %s151 = ssub.s32 %s26, %s33
    %s152 = sor.u32 %s150, %s151
    %p153 = scmp.eq.s32.totalorder %s152, 0
    %s155 = sadd.s32 %s154, 1
    %s156 = scalar_select %p153, %s154, %s155
    %p159 = pneg %p153
    %p160 = scmp.eq.s32.totalorder %s18, 1
    %p161 = por %p159, %p160
    %p162 = scmp.ne.s32.totalorder %s154, %s157
    %p163 = scmp.eq.s32.totalorder %s18, 0
    %p164 = por %p162, %p163
    %p165 = scmp.ne.s32.totalorder %s154, %s157
    %p166 = scmp.eq.s32.totalorder %s23, 1
    %p167 = por %p165, %p166
    %p168 = scmp.ne.s32.totalorder %s157, %s158
    %p169 = scmp.eq.s32.totalorder %s23, 0
    %p170 = por %p168, %p169
    %p171 = scmp.ne.s32.totalorder %s157, %s158
    %p172 = scmp.eq.s32.totalorder %s24, 1
    %p173 = por %p171, %p172
    %p175 = scmp.ne.s32.totalorder %s158, %s174
    %p176 = scmp.eq.s32.totalorder %s24, 0
    %p177 = por %p175, %p176
    %p178 = scmp.le.s32.totalorder 1, %s18
    %p179 = scmp.lt.s32.totalorder %s18, 3
    %p180 = pnand %p178, %p179
    %p181 = pneg %p180
    // Predicated region
    $region9: #{_core_forward.2} parent=5 // pred_check
      _
    $region10: #{_core_forward.2} parent=5 // pred_check_branch
      %183 = sbr.rel (%p180) target = $region12
    $region11: #{_core_forward.2} parent=5 // pred_region
      %s184 = ssub.s32 %s18, 1
      // Predicated region
      $region13: #{_core_forward.2} parent=11 // pred_check
        %p185 = pneg %p79
      $region14: #{_core_forward.2} parent=11 // pred_check_branch
        %187 = sbr.rel (%p185) target = $region16
      $region15: #{_core_forward.2} parent=11 // pred_region
        _
      $region16: #{_core_forward.2} parent=11 // pred_fallthru
        _
      // Predicated region
      $region17: #{_core_forward.2} parent=11 // pred_check
        %p188 = pneg %p100
      $region18: #{_core_forward.2} parent=11 // pred_check_branch
        %190 = sbr.rel (%p188) target = $region20
      $region19: #{_core_forward.2} parent=11 // pred_region
        _
      $region20: #{_core_forward.2} parent=11 // pred_fallthru
        _
      // Predicated region
      $region21: #{_core_forward.2} parent=11 // pred_check
        %p191 = pneg %p121
      $region22: #{_core_forward.2} parent=11 // pred_check_branch
        %193 = sbr.rel (%p191) target = $region24
      $region23: #{_core_forward.2} parent=11 // pred_region
        _
      $region24: #{_core_forward.2} parent=11 // pred_fallthru
        _
      // Predicated region
      $region25: #{_core_forward.2} parent=11 // pred_check
        %p194 = pneg %p142
      $region26: #{_core_forward.2} parent=11 // pred_check_branch
        %196 = sbr.rel (%p194) target = $region28
      $region27: #{_core_forward.2} parent=11 // pred_region
        _
      $region28: #{_core_forward.2} parent=11 // pred_fallthru
        _
    $region12: #{_core_forward.2} parent=5 // pred_fallthru
      _
    %p197 = scmp.lt.s32.totalorder %s18, 2
    // Predicated region
    $region29: #{_core_forward.2} parent=5 // pred_check
      %p198 = pneg %p197
    $region30: #{_core_forward.2} parent=5 // pred_check_branch
      %200 = sbr.rel (%p198) target = $region32
    $region31: #{_core_forward.2} parent=5 // pred_region
      // Predicated region
      $region33: #{_core_forward.2} parent=31 // pred_check
        %p201 = pneg %p52
      $region34: #{_core_forward.2} parent=31 // pred_check_branch
        %203 = sbr.rel (%p201) target = $region36
      $region35: #{_core_forward.2} parent=31 // pred_region
        %p204 = scmp.lt.s32.totalorder %s25, 1
        %s205 = scalar_select %p204, %s25, 1
        %p206 = scmp.lt.s32.totalorder %s26, 0
        %s207 = scalar_select %p206, %s26, 0
        %s208 = sadd.s32 %s207, %s205
        %s209 = smul.addr %s208, 4
        %s210 = scalar_lea.vmem %s1, %s209
      $region36: #{_core_forward.2} parent=31 // pred_fallthru
        _
    $region32: #{_core_forward.2} parent=5 // pred_fallthru
      _
    %p211 = scmp.le.s32.totalorder 1, %s18
    %p212 = scmp.lt.s32.totalorder %s18, 3
    %p213 = pnand %p211, %p212
    %p214 = pneg %p213
    // Predicated region
    $region37: #{_core_forward.2} parent=5 // pred_check
      _
    $region38: #{_core_forward.2} parent=5 // pred_check_branch
      %216 = sbr.rel (%p213) target = $region40
    $region39: #{_core_forward.2} parent=5 // pred_region
      %s217 = ssub.s32 %s18, 1
      %p218 = scmp.lt.s32.totalorder %s27, 1
      %s219 = scalar_select %p218, %s27, 1
      %p220 = scmp.lt.s32.totalorder %s28, 0
      %s221 = scalar_select %p220, %s28, 0
      %s222 = sadd.s32 %s221, %s219
      %s223 = smul.addr %s222, 4
      %s224 = scalar_lea.vmem %s1, %s223
      %p225 = pneg %p58
      %p226 = pneg %p55
      %p227 = pneg %p79
      %p228 = pneg %p76
      %p229 = pneg %p100
      %p230 = pneg %p97
      %p231 = pneg %p121
      %p232 = pneg %p118
      %p233 = pneg %p142
      %p234 = pneg %p139
      %p235 = pneg %p170
      %p236 = pneg %p167
      %p237 = scmp.lt.s32.totalorder %s27, 1
      %s238 = scalar_select %p237, %s27, 1
      %p239 = scmp.lt.s32.totalorder %s28, 0
      %s240 = scalar_select %p239, %s28, 0
      %s241 = sadd.s32 %s240, %s238
      %s242 = smul.addr %s241, 4
      %s243 = scalar_lea.vmem %s6, %s242
      %p244 = scmp.lt.s32.totalorder %s27, 1
      %s245 = scalar_select %p244, %s27, 1
      %p246 = scmp.lt.s32.totalorder %s28, 0
      %s247 = scalar_select %p246, %s28, 0
      %s248 = sadd.s32 %s247, %s245
      %s249 = smul.addr %s248, 4
      %s250 = scalar_lea.vmem %s1, %s249
      %p251 = scmp.lt.s32.totalorder %s27, 1
      %s252 = scalar_select %p251, %s27, 1
      %p253 = scmp.lt.s32.totalorder %s28, 0
      %s254 = scalar_select %p253, %s28, 0
      %s255 = sadd.s32 %s254, %s252
      %s256 = smul.addr %s255, 4
      %s257 = scalar_lea.vmem %s6, %s256
      %v259 = vld [vmem:[%s250] sm:$0xf]
      %v260 = vld [vmem:[%s2] sm:$0xf]
      %v261 = vld [vmem:[%s2 + $0x4] sm:$0xf]
      %v262 = vld [vmem:[%s2 + $0x8] sm:$0xf]
      %v263 = vld [vmem:[%s2 + $0xc] sm:$0xf]
      %v264 = vld [vmem:[%s2 + $0x10] sm:$0xf]
      %v265 = vld [vmem:[%s2 + $0x14] sm:$0xf]
      %v266 = vld [vmem:[%s2 + $0x18] sm:$0xf]
      %v267 = vld [vmem:[%s2 + $0x1c] sm:$0xf]
      %v268 = vld [vmem:[%s2 + $0x20] sm:$0xf]
      %v269 = vld [vmem:[%s2 + $0x24] sm:$0xf]
      %v270 = vld [vmem:[%s2 + $0x28] sm:$0xf]
      %v271 = vld [vmem:[%s2 + $0x2c] sm:$0xf]
      %v272 = vld [vmem:[%s2 + $0x30] sm:$0xf]
      %v273 = vld [vmem:[%s2 + $0x34] sm:$0xf]
      %v274 = vld [vmem:[%s2 + $0x38] sm:$0xf]
      %v275 = vld [vmem:[%s2 + $0x3c] sm:$0xf]
      %v276 = vld [vmem:[%s3] sm:$0x1]
      %v278 = vlaneseq
      %v279 = vshrl.u32 %v278, 7
      %v280 = vsub.s32 0, %v279
      %v281 = vrot.slane %v276, %v280
      %v299 = vunpack.c.l.b16 %v260
      %v300 = vunpack.c.l.b16 %v261
      %v301 = vunpack.c.l.b16 %v262
      %v302 = vunpack.c.l.b16 %v263
      %v303 = vunpack.c.l.b16 %v264
      %v304 = vunpack.c.l.b16 %v265
      %v305 = vunpack.c.l.b16 %v266
      %v306 = vunpack.c.l.b16 %v267
      %v307 = vunpack.c.l.b16 %v268
      %v308 = vunpack.c.l.b16 %v269
      %v309 = vunpack.c.l.b16 %v270
      %v310 = vunpack.c.l.b16 %v271
      %v311 = vunpack.c.l.b16 %v272
      %v312 = vunpack.c.l.b16 %v273
      %v313 = vunpack.c.l.b16 %v274
      %v314 = vunpack.c.l.b16 %v275
      %v315 = vpack.c.b16 %v300, %v299
      %v316 = vpack.c.b16 %v302, %v301
      %v317 = vpack.c.b16 %v304, %v303
      %v318 = vpack.c.b16 %v306, %v305
      %v319 = vpack.c.b16 %v308, %v307
      %v320 = vpack.c.b16 %v310, %v309
      %v321 = vpack.c.b16 %v312, %v311
      %v322 = vpack.c.b16 %v314, %v313
      %331 = vmatprep.subr.bf16.mxu0 0
      %332 = vmatpush1.bf16.msra.mxu0 %v315
      %333 = vmatprep.subr.bf16.mxu0 0
      %334 = vmatpush1.bf16.msra.mxu0 %v316
      %335 = vmatprep.subr.bf16.mxu0 0
      %336 = vmatpush1.bf16.msra.mxu0 %v317
      %337 = vmatprep.subr.bf16.mxu0 0
      %338 = vmatpush1.bf16.msra.mxu0 %v318
      %339 = vmatprep.subr.bf16.mxu0 0
      %340 = vmatpush1.bf16.msra.mxu0 %v319
      %341 = vmatprep.subr.bf16.mxu0 0
      %342 = vmatpush1.bf16.msra.mxu0 %v320
      %343 = vmatprep.subr.bf16.mxu0 0
      %344 = vmatpush1.bf16.msra.mxu0 %v321
      %345 = vmatprep.subr.bf16.mxu0 0
      %346 = vmatpush1.bf16.msra.mxu0 %v322
      %347 = vmatprep.subr.bf16.mxu0 0
      %348 = vmatpush1.bf16.msra.mxu0 0
      %349 = vmatprep.subr.bf16.mxu0 0
      %350 = vmatpush1.bf16.msra.mxu0 0
      %351 = vmatprep.subr.bf16.mxu0 0
      %352 = vmatpush1.bf16.msra.mxu0 0
      %353 = vmatprep.subr.bf16.mxu0 0
      %354 = vmatpush1.bf16.msra.mxu0 0
      %355 = vmatprep.subr.bf16.mxu0 0
      %356 = vmatpush1.bf16.msra.mxu0 0
      %357 = vmatprep.subr.bf16.mxu0 0
      %358 = vmatpush1.bf16.msra.mxu0 0
      %359 = vmatprep.subr.bf16.mxu0 0
      %360 = vmatpush1.bf16.msra.mxu0 0
      %361 = vmatprep.subr.bf16.mxu0 0
      %362 = vmatpush1.bf16.msra.mxu0 0
      %363 = vmatprep.mubr.bf16.mxu0 0
      %364 = vmatmul.mubr.bf16.gmra.mrb[0].mxu0 %v259
      %v365 = vpop.f32.mrb[0].mxu0
      %v366 = vadd.f32 %v281, %v365
      %v367 = vpop.f32.mrb[0].mxu0
      %v368 = vpop.f32.mrb[0].mxu0
      %v369 = vpop.f32.mrb[0].mxu0
      %370 = vdwg.mxu0
      %v371 = vmul.f32 %v366, %v366
      %v372 = vmul.f32 %v366, %v371
      %v373 = vmul.f32 %v372, 0.044715
      %v374 = vadd.f32 %v366, %v373
      %v375 = vmul.f32 %v374, 0.7978846
      %v376 = vtanh.pop %v375
      %v377 = vadd.f32 %v376, 1.0
      %v378 = vmul.f32 %v377, 0.5
      %v379 = vmul.f32 %v366, %v378
      %v380 = vpack.c.bf16 %v379, %v379
      %v381 = vld [vmem:[%s4] sm:$0xf]
      %v382 = vld [vmem:[%s4 + $0x4] sm:$0xf]
      %v383 = vld [vmem:[%s4 + $0x8] sm:$0xf]
      %v384 = vld [vmem:[%s4 + $0xc] sm:$0xf]
      %v385 = vld [vmem:[%s4 + $0x10] sm:$0xf]
      %v386 = vld [vmem:[%s4 + $0x14] sm:$0xf]
      %v387 = vld [vmem:[%s4 + $0x18] sm:$0xf]
      %v388 = vld [vmem:[%s4 + $0x1c] sm:$0xf]
      %v389 = vld [vmem:[%s4 + $0x20] sm:$0xf]
      %v390 = vld [vmem:[%s4 + $0x24] sm:$0xf]
      %v391 = vld [vmem:[%s4 + $0x28] sm:$0xf]
      %v392 = vld [vmem:[%s4 + $0x2c] sm:$0xf]
      %v393 = vld [vmem:[%s4 + $0x30] sm:$0xf]
      %v394 = vld [vmem:[%s4 + $0x34] sm:$0xf]
      %v395 = vld [vmem:[%s4 + $0x38] sm:$0xf]
      %v396 = vld [vmem:[%s4 + $0x3c] sm:$0xf]
      %v397 = vld [vmem:[%s5] sm:$0x1]
      %v399 = vlaneseq
      %v400 = vshrl.u32 %v399, 7
      %v401 = vsub.s32 0, %v400
      %v402 = vrot.slane %v397, %v401
      %v420 = vunpack.c.l.b16 %v381
      %v421 = vunpack.c.l.b16 %v382
      %v422 = vunpack.c.l.b16 %v383
      %v423 = vunpack.c.l.b16 %v384
      %v424 = vunpack.c.l.b16 %v385
      %v425 = vunpack.c.l.b16 %v386
      %v426 = vunpack.c.l.b16 %v387
      %v427 = vunpack.c.l.b16 %v388
      %v428 = vunpack.c.l.b16 %v389
      %v429 = vunpack.c.l.b16 %v390
      %v430 = vunpack.c.l.b16 %v391
      %v431 = vunpack.c.l.b16 %v392
      %v432 = vunpack.c.l.b16 %v393
      %v433 = vunpack.c.l.b16 %v394
      %v434 = vunpack.c.l.b16 %v395
      %v435 = vunpack.c.l.b16 %v396
      %v436 = vpack.c.b16 %v421, %v420
      %v437 = vpack.c.b16 %v423, %v422
      %v438 = vpack.c.b16 %v425, %v424
      %v439 = vpack.c.b16 %v427, %v426
      %v440 = vpack.c.b16 %v429, %v428
      %v441 = vpack.c.b16 %v431, %v430
      %v442 = vpack.c.b16 %v433, %v432
      %v443 = vpack.c.b16 %v435, %v434
      %452 = vmatprep.subr.bf16.mxu0 0
      %453 = vmatpush1.bf16.msra.mxu0 %v436
      %454 = vmatprep.subr.bf16.mxu0 0
      %455 = vmatpush1.bf16.msra.mxu0 %v437
      %456 = vmatprep.subr.bf16.mxu0 0
      %457 = vmatpush1.bf16.msra.mxu0 %v438
      %458 = vmatprep.subr.bf16.mxu0 0
      %459 = vmatpush1.bf16.msra.mxu0 %v439
      %460 = vmatprep.subr.bf16.mxu0 0
      %461 = vmatpush1.bf16.msra.mxu0 %v440
      %462 = vmatprep.subr.bf16.mxu0 0
      %463 = vmatpush1.bf16.msra.mxu0 %v441
      %464 = vmatprep.subr.bf16.mxu0 0
      %465 = vmatpush1.bf16.msra.mxu0 %v442
      %466 = vmatprep.subr.bf16.mxu0 0
      %467 = vmatpush1.bf16.msra.mxu0 %v443
      %468 = vmatprep.subr.bf16.mxu0 0
      %469 = vmatpush1.bf16.msra.mxu0 0
      %470 = vmatprep.subr.bf16.mxu0 0
      %471 = vmatpush1.bf16.msra.mxu0 0
      %472 = vmatprep.subr.bf16.mxu0 0
      %473 = vmatpush1.bf16.msra.mxu0 0
      %474 = vmatprep.subr.bf16.mxu0 0
      %475 = vmatpush1.bf16.msra.mxu0 0
      %476 = vmatprep.subr.bf16.mxu0 0
      %477 = vmatpush1.bf16.msra.mxu0 0
      %478 = vmatprep.subr.bf16.mxu0 0
      %479 = vmatpush1.bf16.msra.mxu0 0
      %480 = vmatprep.subr.bf16.mxu0 0
      %481 = vmatpush1.bf16.msra.mxu0 0
      %482 = vmatprep.subr.bf16.mxu0 0
      %483 = vmatpush1.bf16.msra.mxu0 0
      %484 = vmatprep.mubr.bf16.mxu0 0
      %485 = vmatmul.mubr.bf16.gmra.mrb[0].mxu0 %v380
      %v486 = vpop.f32.mrb[0].mxu0
      %v487 = vadd.f32 %v402, %v486
      %v488 = vpop.f32.mrb[0].mxu0
      %v489 = vpop.f32.mrb[0].mxu0
      %v490 = vpop.f32.mrb[0].mxu0
      %491 = vdwg.mxu0
      %s492 = smul.u32 %s28, 8
      %v493 = vlaneseq
      %v494 = vshrl.u32 %v493, 7
      %v495 = vstv %s492
      %v496 = vadd.s32 %v495, %v494
      %s497 = sld [smem:[#allocation3 + %s27]]
      %v498 = vstv %s497
      %vm499 = vcmp.lt.s32.totalorder %v496, %v498
      %v500 = vsel %vm499, 1, 0
      %vm501 = vcmp.eq.s32.totalorder %v500, 1
      %v502 = vsel %vm501, %v487, 0.0
      %v503 = vpack.c.bf16 %v502, %v502
      %504 = vst [vmem:[%s257] sm:$0xf] %v503
      %p505 = scmp.lt.s32.totalorder %s27, 1
      %s506 = scalar_select %p505, %s27, 1
      %p507 = scmp.lt.s32.totalorder %s28, 0
      %s508 = scalar_select %p507, %s28, 0
      %s509 = sadd.s32 %s508, %s506
      %s510 = smul.addr %s509, 4
      %s511 = scalar_lea.vmem %s6, %s510
      // Predicated region
      $region41: #{_core_forward.2} parent=39 // pred_check
        %p512 = pneg %p167
      $region42: #{_core_forward.2} parent=39 // pred_check_branch
        %514 = sbr.rel (%p512) target = $region44
      $region43: #{_core_forward.2} parent=39 // pred_region
        _
      $region44: #{_core_forward.2} parent=39 // pred_fallthru
        _
    $region40: #{_core_forward.2} parent=5 // pred_fallthru
      _
    %p515 = scmp.le.s32.totalorder 2, %s18
    // Predicated region
    $region45: #{_core_forward.2} parent=5 // pred_check
      %p516 = pneg %p515
    $region46: #{_core_forward.2} parent=5 // pred_check_branch
      %518 = sbr.rel (%p516) target = $region48
    $region47: #{_core_forward.2} parent=5 // pred_region
      %s519 = ssub.s32 %s18, 2
      // Predicated region
      $region49: #{_core_forward.2} parent=47 // pred_check
        %p520 = pneg %p173
      $region50: #{_core_forward.2} parent=47 // pred_check_branch
        %522 = sbr.rel (%p520) target = $region52
      $region51: #{_core_forward.2} parent=47 // pred_region
        %p523 = scmp.lt.s32.totalorder %s29, 1
        %s524 = scalar_select %p523, %s29, 1
        %p525 = scmp.lt.s32.totalorder %s30, 0
        %s526 = scalar_select %p525, %s30, 0
        %s527 = sadd.s32 %s526, %s524
        %s528 = smul.addr %s527, 4
        %s529 = scalar_lea.vmem %s6, %s528
      $region52: #{_core_forward.2} parent=47 // pred_fallthru
        _
    $region48: #{_core_forward.2} parent=5 // pred_fallthru
      _
  $region6: #{_core_forward.2} parent=0 // loop_footer
    %s22 = sadd.s32 1, %s18
  $region7: #{_core_forward.2} parent=0 // loop_footer_branch
    %17 = sbr.rel target = $region3
  $region8: #{_core_forward.2} parent=0 // loop_exit
    _

// kernel: _core_forward.3
$region0: #{_core_forward.3}
  #allocation0 [shape = 'u32[]', space=smem, size = 0x4, offset = 0x4, fixed_abs, tag = 'smem constant byte address 0x4 - core index']
  #allocation1 [shape = 'u32[144,128]{1,0:T(1,128)}', space=vmem, size = 0x12000, scoped, tag = 'internal scratch']
  #allocation2 [shape = 's32[1]{0}', space=sflag, size = 0x4, scoped, tag = 'scoped memory for _core_forward.3']
  #allocation3 [shape = 'u8[512]{0}', space=smem, size = 0x200, scoped, tag = 'prefetched SMEM operand 0']
  %s0 = inlined_call_operand.vmem [shape: s32[2], index: 0, kind: input, shape index: {}]
  %s1 = inlined_call_operand.vmem [shape: bf16[2,16,128], index: 1, kind: input, shape index: {}]
  %s2 = inlined_call_operand.vmem [shape: bf16[2,16,128], index: 2, kind: input, shape index: {}]
  %s3 = inlined_call_operand.vmem [shape: f32[2,2,128], index: 3, kind: input, shape index: {}]
  %s4 = inlined_call_operand.vmem [shape: f32[2,2], index: 4, kind: input, shape index: {}]
  %s5 = inlined_call_operand.vmem [shape: bf16[128,128], index: 5, kind: input, shape index: {}]
  %s6 = inlined_call_operand.vmem [shape: bf16[128,128], index: 6, kind: input, shape index: {}]
  %s7 = inlined_call_operand.vmem [shape: bf16[128,128], index: 7, kind: input, shape index: {}]
  %s8 = inlined_call_operand.vmem [shape: f32[1,128], index: 8, kind: input, shape index: {}]
  %s9 = inlined_call_operand.hbm [shape: f32[2,16,128], index: 9, kind: output, shape index: {}]
  %s10 = sld [smem:[#allocation0]]
  $region69: #{_core_forward.3} parent=0
    _
  %s12 = ssub.s32 1, %s10
  %s13 = scalar_select 0, %s12, %s10
  %s14 = sshll.u32 %s0, 4
  %s15 = int_to_ptr.vmem [resolvable:$true] %s14
  %17 = dma.vmem_to_smem %s15, 16, [#allocation3], [#allocation2]
  %18 = dma.done [#allocation2], 16
  %19 = sfence
  $region1: #{_core_forward.3} parent=0
    #allocation4 [shape = 'u8[1024]{0}', space=smem, size = 0x400, scoped, tag = 'input window, operand 4, single buffered']
    #allocation5 [shape = 's32[2]{0}', space=sflag, size = 0x8, scoped, tag = 'scoped memory for _core_forward.3']
    #allocation6 [shape = 's32[2]{0}', space=sflag, size = 0x8, scoped, tag = 'scoped memory for _core_forward.3']
    #allocation7 [shape = 'u8[16384]{0}', space=vmem, size = 0x4000, scoped, tag = 'output window, operand 0']
    %20 = vsyncpa [#allocation6], 0
    %21 = vsyncpa [#allocation5], 0
    %s22 = scalar_lea.sflag [#allocation5], 1
    %23 = vsyncpa %s22, 0
    loop: start=0, step=1, limit=4
    $region2: #{_core_forward.3} parent=1 // loop_pre_header
      _
    $region3: #{_core_forward.3} parent=1 // loop_header
      %s25 = sphi 0, %s29
      %p26 = scmp.ge.s32.totalorder %s25, 4
      %s32 = sphi 0, %s44
      %s33 = sphi 0, %s40
      %s34 = sphi 0, %s32
      %s35 = sphi 0, %s33
      %s36 = sphi 0, %s34
      %s37 = sphi 0, %s35
      %s49 = sphi 0, %s51
      %s52 = sphi 0, %s49
      %s53 = sphi 0, %s52
      %s69 = sphi 0, %s53
      %s77 = sphi 0, %s79
      %s80 = sphi 0, %s77
      %s81 = sphi 0, %s80
      %s97 = sphi 0, %s81
      %s103 = sphi 0, %s105
      %s106 = sphi 0, %s103
      %s107 = sphi 0, %s106
      %s123 = sphi 0, %s107
      %s127 = sphi 0, %s127
      %s129 = sphi 0, %s127
      %s130 = sphi 0, %s129
      %s144 = sphi 0, %s130
      %s148 = sphi 0, %s148
      %s150 = sphi 0, %s148
      %s151 = sphi 0, %s150
      %s165 = sphi 0, %s151
      %s169 = sphi 0, %s169
      %s171 = sphi 0, %s169
      %s172 = sphi 0, %s171
      %s186 = sphi 0, %s172
      %s190 = sphi 0, %s190
      %s192 = sphi 0, %s190
      %s193 = sphi 0, %s192
      %s207 = sphi 0, %s193
      %s211 = sphi 0, %s211
      %s213 = sphi 0, %s211
      %s214 = sphi 0, %s213
      %s228 = sphi 0, %s214
      %s236 = sphi 0, %s238
      %s239 = sphi 0, %s236
      %s240 = sphi 0, %s239
      %s256 = sphi 0, %s240
    $region4: #{_core_forward.3} parent=1 // loop_header_branch
      %28 = sbr.rel (%p26) target = $region8
    $region5: #{_core_forward.3} parent=1 // loop_body
      %s30 = ssub.s32 %s25, 1
      %s31 = ssub.s32 %s25, 2
      %s38 = sadd.s32 1, %s33
      %p39 = scmp.ge.s32.totalorder %s38, 1
      %s40 = scalar_select %p39, 0, %s38
      %s41 = sadd.s32 1, %s32
      %s42 = scalar_select %p39, %s41, %s32
      %p43 = scmp.ge.s32.totalorder %s42, 2
      %s44 = scalar_select %p43, 0, %s42
      %s45 = ssub.s32 %s32, %s44
      %s46 = ssub.s32 %s33, %s40
      %s47 = sor.u32 %s45, %s46
      %p48 = scmp.eq.s32.totalorder %s47, 0
      %s50 = sadd.s32 %s49, 1
      %s51 = scalar_select %p48, %s49, %s50
      %p54 = pneg %p48
      %p55 = scmp.eq.s32.totalorder %s25, 1
      %p56 = por %p54, %p55
      %p57 = scmp.ne.s32.totalorder %s49, %s52
      %p58 = scmp.eq.s32.totalorder %s25, 0
      %p59 = por %p57, %p58
      %p60 = scmp.ne.s32.totalorder %s49, %s52
      %p61 = scmp.eq.s32.totalorder %s30, 1
      %p62 = por %p60, %p61
      %p63 = scmp.ne.s32.totalorder %s52, %s53
      %p64 = scmp.eq.s32.totalorder %s30, 0
      %p65 = por %p63, %p64
      %p66 = scmp.ne.s32.totalorder %s52, %s53
      %p67 = scmp.eq.s32.totalorder %s31, 1
      %p68 = por %p66, %p67
      %p70 = scmp.ne.s32.totalorder %s53, %s69
      %p71 = scmp.eq.s32.totalorder %s31, 0
      %p72 = por %p70, %p71
      %s73 = ssub.s32 %s32, %s44
      %s74 = ssub.s32 %s33, %s40
      %s75 = sor.u32 %s73, %s74
      %p76 = scmp.eq.s32.totalorder %s75, 0
      %s78 = sadd.s32 %s77, 1
      %s79 = scalar_select %p76, %s77, %s78
      %p82 = pneg %p76
      %p83 = scmp.eq.s32.totalorder %s25, 1
      %p84 = por %p82, %p83
      %p85 = scmp.ne.s32.totalorder %s77, %s80
      %p86 = scmp.eq.s32.totalorder %s25, 0
      %p87 = por %p85, %p86
      %p88 = scmp.ne.s32.totalorder %s77, %s80
      %p89 = scmp.eq.s32.totalorder %s30, 1
      %p90 = por %p88, %p89
      %p91 = scmp.ne.s32.totalorder %s80, %s81
      %p92 = scmp.eq.s32.totalorder %s30, 0
      %p93 = por %p91, %p92
      %p94 = scmp.ne.s32.totalorder %s80, %s81
      %p95 = scmp.eq.s32.totalorder %s31, 1
      %p96 = por %p94, %p95
      %p98 = scmp.ne.s32.totalorder %s81, %s97
      %p99 = scmp.eq.s32.totalorder %s31, 0
      %p100 = por %p98, %p99
      %s101 = ssub.s32 %s32, %s44
      %p102 = scmp.eq.s32.totalorder %s101, 0
      %s104 = sadd.s32 %s103, 1
      %s105 = scalar_select %p102, %s103, %s104
      %p108 = pneg %p102
      %p109 = scmp.eq.s32.totalorder %s25, 1
      %p110 = por %p108, %p109
      %p111 = scmp.ne.s32.totalorder %s103, %s106
      %p112 = scmp.eq.s32.totalorder %s25, 0
      %p113 = por %p111, %p112
      %p114 = scmp.ne.s32.totalorder %s103, %s106
      %p115 = scmp.eq.s32.totalorder %s30, 1
      %p116 = por %p114, %p115
      %p117 = scmp.ne.s32.totalorder %s106, %s107
      %p118 = scmp.eq.s32.totalorder %s30, 0
      %p119 = por %p117, %p118
      %p120 = scmp.ne.s32.totalorder %s106, %s107
      %p121 = scmp.eq.s32.totalorder %s31, 1
      %p122 = por %p120, %p121
      %p124 = scmp.ne.s32.totalorder %s107, %s123
      %p125 = scmp.eq.s32.totalorder %s31, 0
      %p126 = por %p124, %p125
      %s128 = sadd.s32 %s127, 1
      %p131 = scmp.eq.s32.totalorder %s25, 1
      %p132 = scmp.ne.s32.totalorder %s127, %s129
      %p133 = scmp.eq.s32.totalorder %s25, 0
      %p134 = por %p132, %p133
      %p135 = scmp.ne.s32.totalorder %s127, %s129
      %p136 = scmp.eq.s32.totalorder %s30, 1
      %p137 = por %p135, %p136
      %p138 = scmp.ne.s32.totalorder %s129, %s130
      %p139 = scmp.eq.s32.totalorder %s30, 0
      %p140 = por %p138, %p139
      %p141 = scmp.ne.s32.totalorder %s129, %s130
      %p142 = scmp.eq.s32.totalorder %s31, 1
      %p143 = por %p141, %p142
      %p145 = scmp.ne.s32.totalorder %s130, %s144
      %p146 = scmp.eq.s32.totalorder %s31, 0
      %p147 = por %p145, %p146
      %s149 = sadd.s32 %s148, 1
      %p152 = scmp.eq.s32.totalorder %s25, 1
      %p153 = scmp.ne.s32.totalorder %s148, %s150
      %p154 = scmp.eq.s32.totalorder %s25, 0
      %p155 = por %p153, %p154
      %p156 = scmp.ne.s32.totalorder %s148, %s150
      %p157 = scmp.eq.s32.totalorder %s30, 1
      %p158 = por %p156, %p157
      %p159 = scmp.ne.s32.totalorder %s150, %s151
      %p160 = scmp.eq.s32.totalorder %s30, 0
      %p161 = por %p159, %p160
      %p162 = scmp.ne.s32.totalorder %s150, %s151
      %p163 = scmp.eq.s32.totalorder %s31, 1
      %p164 = por %p162, %p163
      %p166 = scmp.ne.s32.totalorder %s151, %s165
      %p167 = scmp.eq.s32.totalorder %s31, 0
      %p168 = por %p166, %p167
      %s170 = sadd.s32 %s169, 1
      %p173 = scmp.eq.s32.totalorder %s25, 1
      %p174 = scmp.ne.s32.totalorder %s169, %s171
      %p175 = scmp.eq.s32.totalorder %s25, 0
      %p176 = por %p174, %p175
      %p177 = scmp.ne.s32.totalorder %s169, %s171
      %p178 = scmp.eq.s32.totalorder %s30, 1
      %p179 = por %p177, %p178
      %p180 = scmp.ne.s32.totalorder %s171, %s172
      %p181 = scmp.eq.s32.totalorder %s30, 0
      %p182 = por %p180, %p181
      %p183 = scmp.ne.s32.totalorder %s171, %s172
      %p184 = scmp.eq.s32.totalorder %s31, 1
      %p185 = por %p183, %p184
      %p187 = scmp.ne.s32.totalorder %s172, %s186
      %p188 = scmp.eq.s32.totalorder %s31, 0
      %p189 = por %p187, %p188
      %s191 = sadd.s32 %s190, 1
      %p194 = scmp.eq.s32.totalorder %s25, 1
      %p195 = scmp.ne.s32.totalorder %s190, %s192
      %p196 = scmp.eq.s32.totalorder %s25, 0
      %p197 = por %p195, %p196
      %p198 = scmp.ne.s32.totalorder %s190, %s192
      %p199 = scmp.eq.s32.totalorder %s30, 1
      %p200 = por %p198, %p199
      %p201 = scmp.ne.s32.totalorder %s192, %s193
      %p202 = scmp.eq.s32.totalorder %s30, 0
      %p203 = por %p201, %p202
      %p204 = scmp.ne.s32.totalorder %s192, %s193
      %p205 = scmp.eq.s32.totalorder %s31, 1
      %p206 = por %p204, %p205
      %p208 = scmp.ne.s32.totalorder %s193, %s207
      %p209 = scmp.eq.s32.totalorder %s31, 0
      %p210 = por %p208, %p209
      %s212 = sadd.s32 %s211, 1
      %p215 = scmp.eq.s32.totalorder %s25, 1
      %p216 = scmp.ne.s32.totalorder %s211, %s213
      %p217 = scmp.eq.s32.totalorder %s25, 0
      %p218 = por %p216, %p217
      %p219 = scmp.ne.s32.totalorder %s211, %s213
      %p220 = scmp.eq.s32.totalorder %s30, 1
      %p221 = por %p219, %p220
      %p222 = scmp.ne.s32.totalorder %s213, %s214
      %p223 = scmp.eq.s32.totalorder %s30, 0
      %p224 = por %p222, %p223
      %p225 = scmp.ne.s32.totalorder %s213, %s214
      %p226 = scmp.eq.s32.totalorder %s31, 1
      %p227 = por %p225, %p226
      %p229 = scmp.ne.s32.totalorder %s214, %s228
      %p230 = scmp.eq.s32.totalorder %s31, 0
      %p231 = por %p229, %p230
      %s232 = ssub.s32 %s32, %s44
      %s233 = ssub.s32 %s33, %s40
      %s234 = sor.u32 %s232, %s233
      %p235 = scmp.eq.s32.totalorder %s234, 0
      %s237 = sadd.s32 %s236, 1
      %s238 = scalar_select %p235, %s236, %s237
      %p241 = pneg %p235
      %p242 = scmp.eq.s32.totalorder %s25, 1
      %p243 = por %p241, %p242
      %p244 = scmp.ne.s32.totalorder %s236, %s239
      %p245 = scmp.eq.s32.totalorder %s25, 0
      %p246 = por %p244, %p245
      %p247 = scmp.ne.s32.totalorder %s236, %s239
      %p248 = scmp.eq.s32.totalorder %s30, 1
      %p249 = por %p247, %p248
      %p250 = scmp.ne.s32.totalorder %s239, %s240
      %p251 = scmp.eq.s32.totalorder %s30, 0
      %p252 = por %p250, %p251
      %p253 = scmp.ne.s32.totalorder %s239, %s240
      %p254 = scmp.eq.s32.totalorder %s31, 1
      %p255 = por %p253, %p254
      %p257 = scmp.ne.s32.totalorder %s240, %s256
      %p258 = scmp.eq.s32.totalorder %s31, 0
      %p259 = por %p257, %p258
      %p260 = scmp.le.s32.totalorder 1, %s25
      %p261 = scmp.lt.s32.totalorder %s25, 3
      %p262 = pnand %p260, %p261
      %p263 = pneg %p262
      // Predicated region
      $region9: #{_core_forward.3} parent=5 // pred_check
        _
      $region10: #{_core_forward.3} parent=5 // pred_check_branch
        %265 = sbr.rel (%p262) target = $region12
      $region11: #{_core_forward.3} parent=5 // pred_region
        %s266 = ssub.s32 %s25, 1
        // Predicated region
        $region13: #{_core_forward.3} parent=11 // pred_check
          %p267 = pneg %p140
        $region14: #{_core_forward.3} parent=11 // pred_check_branch
          %269 = sbr.rel (%p267) target = $region16
        $region15: #{_core_forward.3} parent=11 // pred_region
          %s271 = ssub.s32 32, 32
          %272 = vsyncadd [#allocation6], %s271
          %s274 = sshll.u32 %s4, 4
          %s275 = int_to_ptr.vmem [resolvable:$true] %s274
          %277 = dma.vmem_to_smem %s275, 32, [#allocation4], [#allocation6]
        $region16: #{_core_forward.3} parent=11 // pred_fallthru
          _
        // Predicated region
        $region17: #{_core_forward.3} parent=11 // pred_check
          %p278 = pneg %p161
        $region18: #{_core_forward.3} parent=11 // pred_check_branch
          %280 = sbr.rel (%p278) target = $region20
        $region19: #{_core_forward.3} parent=11 // pred_region
          _
        $region20: #{_core_forward.3} parent=11 // pred_fallthru
          _
        // Predicated region
        $region21: #{_core_forward.3} parent=11 // pred_check
          %p281 = pneg %p182
        $region22: #{_core_forward.3} parent=11 // pred_check_branch
          %283 = sbr.rel (%p281) target = $region24
        $region23: #{_core_forward.3} parent=11 // pred_region
          _
        $region24: #{_core_forward.3} parent=11 // pred_fallthru
          _
        // Predicated region
        $region25: #{_core_forward.3} parent=11 // pred_check
          %p284 = pneg %p203
        $region26: #{_core_forward.3} parent=11 // pred_check_branch
          %286 = sbr.rel (%p284) target = $region28
        $region27: #{_core_forward.3} parent=11 // pred_region
          _
        $region28: #{_core_forward.3} parent=11 // pred_fallthru
          _
        // Predicated region
        $region29: #{_core_forward.3} parent=11 // pred_check
          %p287 = pneg %p224
        $region30: #{_core_forward.3} parent=11 // pred_check_branch
          %289 = sbr.rel (%p287) target = $region32
        $region31: #{_core_forward.3} parent=11 // pred_region
          _
        $region32: #{_core_forward.3} parent=11 // pred_fallthru
          _
      $region12: #{_core_forward.3} parent=5 // pred_fallthru
        _
      %p290 = scmp.lt.s32.totalorder %s25, 2
      // Predicated region
      $region33: #{_core_forward.3} parent=5 // pred_check
        %p291 = pneg %p290
      $region34: #{_core_forward.3} parent=5 // pred_check_branch
        %293 = sbr.rel (%p291) target = $region36
      $region35: #{_core_forward.3} parent=5 // pred_region
        // Predicated region
        $region37: #{_core_forward.3} parent=35 // pred_check
          %p294 = pneg %p59
        $region38: #{_core_forward.3} parent=35 // pred_check_branch
          %296 = sbr.rel (%p294) target = $region40
        $region39: #{_core_forward.3} parent=35 // pred_region
          %s297 = smul.u32 2, %s33
          %p298 = scmp.lt.s32.totalorder %s32, 1
          %s299 = scalar_select %p298, %s32, 1
          %p300 = scmp.lt.s32.totalorder %s297, 1
          %s301 = scalar_select %p300, %s297, 1
          %s302 = smul.addr %s299, 2
          %s303 = sadd.s32 %s301, %s302
          %s304 = smul.addr %s303, 4
          %s305 = scalar_lea.vmem %s1, %s304
          %s306 = smul.u32 2, %s33
        $region40: #{_core_forward.3} parent=35 // pred_fallthru
          _
        // Predicated region
        $region41: #{_core_forward.3} parent=35 // pred_check
          %p307 = pneg %p87
        $region42: #{_core_forward.3} parent=35 // pred_check_branch
          %309 = sbr.rel (%p307) target = $region44
        $region43: #{_core_forward.3} parent=35 // pred_region
          %s310 = smul.u32 2, %s33
          %p311 = scmp.lt.s32.totalorder %s32, 1
          %s312 = scalar_select %p311, %s32, 1
          %p313 = scmp.lt.s32.totalorder %s310, 1
          %s314 = scalar_select %p313, %s310, 1
          %s315 = smul.addr %s312, 2
          %s316 = sadd.s32 %s314, %s315
          %s317 = smul.addr %s316, 4
          %s318 = scalar_lea.vmem %s2, %s317
          %s319 = smul.u32 2, %s33
        $region44: #{_core_forward.3} parent=35 // pred_fallthru
          _
        // Predicated region
        $region45: #{_core_forward.3} parent=35 // pred_check
          %p320 = pneg %p113
        $region46: #{_core_forward.3} parent=35 // pred_check_branch
          %322 = sbr.rel (%p320) target = $region48
        $region47: #{_core_forward.3} parent=35 // pred_region
          %p323 = scmp.lt.s32.totalorder %s32, 1
          %s324 = scalar_select %p323, %s32, 1
          %s325 = smul.addr %s324, 2
          %s326 = scalar_lea.vmem %s3, %s325
        $region48: #{_core_forward.3} parent=35 // pred_fallthru
          _
      $region36: #{_core_forward.3} parent=5 // pred_fallthru
        _
      %p327 = scmp.le.s32.totalorder 1, %s25
      %p328 = scmp.lt.s32.totalorder %s25, 3
      %p329 = pnand %p327, %p328
      %p330 = pneg %p329
      // Predicated region
      $region49: #{_core_forward.3} parent=5 // pred_check
        _
      $region50: #{_core_forward.3} parent=5 // pred_check_branch
        %332 = sbr.rel (%p329) target = $region52
      $region51: #{_core_forward.3} parent=5 // pred_region
        %s333 = ssub.s32 %s25, 1
        // Predicated region
        $region53: #{_core_forward.3} parent=51 // pred_check
          %p334 = pneg %p140
        $region54: #{_core_forward.3} parent=51 // pred_check_branch
          %336 = sbr.rel (%p334) target = $region56
        $region55: #{_core_forward.3} parent=51 // pred_region
          %337 = dma.done [#allocation6], 32
        $region56: #{_core_forward.3} parent=51 // pred_fallthru
          _
        %338 = sfence
        %s339 = smul.u32 2, %s35
        %p340 = scmp.lt.s32.totalorder %s34, 1
        %s341 = scalar_select %p340, %s34, 1
        %p342 = scmp.lt.s32.totalorder %s339, 1
        %s343 = scalar_select %p342, %s339, 1
        %s344 = smul.addr %s341, 2
        %s345 = sadd.s32 %s343, %s344
        %s346 = smul.addr %s345, 4
        %s347 = scalar_lea.vmem %s1, %s346
        %p348 = pneg %p65
        %p349 = pneg %p62
        %s350 = smul.u32 2, %s35
        %p351 = scmp.lt.s32.totalorder %s34, 1
        %s352 = scalar_select %p351, %s34, 1
        %p353 = scmp.lt.s32.totalorder %s350, 1
        %s354 = scalar_select %p353, %s350, 1
        %s355 = smul.addr %s352, 2
        %s356 = sadd.s32 %s354, %s355
        %s357 = smul.addr %s356, 4
        %s358 = scalar_lea.vmem %s2, %s357
        %p359 = pneg %p93
        %p360 = pneg %p90
        %p361 = scmp.lt.s32.totalorder %s34, 1
        %s362 = scalar_select %p361, %s34, 1
        %s363 = smul.addr %s362, 2
        %s364 = scalar_lea.vmem %s3, %s363
        %p365 = pneg %p119
        %p366 = pneg %p116
        %p367 = pneg %p140
        %p368 = pneg %p137
        %p369 = pneg %p161
        %p370 = pneg %p158
        %p371 = pneg %p182
        %p372 = pneg %p179
        %p373 = pneg %p203
        %p374 = pneg %p200
        %p375 = pneg %p224
        %p376 = pneg %p221
        %p377 = pneg %p252
        %p378 = pneg %p249
        %s379 = sand.u32 %s239, 1
        %s380 = scalar_lea.sflag [#allocation5], %s379
        %s381 = sand.u32 %s239, 1
        %s382 = smul.addr %s381, 16
        %s383 = scalar_lea.vmem [#allocation7], %s382
        %s384 = smul.u32 2, %s35
        %p385 = scmp.lt.s32.totalorder %s34, 1
        %s386 = scalar_select %p385, %s34, 1
        %p387 = scmp.lt.s32.totalorder %s384, 1
        %s388 = scalar_select %p387, %s384, 1
        %s389 = smul.addr %s386, 2
        %s390 = sadd.s32 %s388, %s389
        %s391 = smul.addr %s390, 4
        %s392 = scalar_lea.vmem %s1, %s391
        %s393 = smul.u32 2, %s35
        %s394 = smul.u32 2, %s35
        %p395 = scmp.lt.s32.totalorder %s34, 1
        %s396 = scalar_select %p395, %s34, 1
        %p397 = scmp.lt.s32.totalorder %s394, 1
        %s398 = scalar_select %p397, %s394, 1
        %s399 = smul.addr %s396, 2
        %s400 = sadd.s32 %s398, %s399
        %s401 = smul.addr %s400, 4
        %s402 = scalar_lea.vmem %s2, %s401
        %s403 = smul.u32 2, %s35
        %p404 = scmp.lt.s32.totalorder %s34, 1
        %s405 = scalar_select %p404, %s34, 1
        %s406 = smul.addr %s405, 2
        %s407 = scalar_lea.vmem %s3, %s406
        %s408 = smul.u32 2, %s35
        %v410 = vld [vmem:[%s402] sm:$0xf]
        %v411 = vld [vmem:[%s402 + $0x4] sm:$0xf]
        %v412 = vld [vmem:[%s6] sm:$0xf]
        %v413 = vld [vmem:[%s6 + $0x4] sm:$0xf]
        %v414 = vld [vmem:[%s6 + $0x8] sm:$0xf]
        %v415 = vld [vmem:[%s6 + $0xc] sm:$0xf]
        %v416 = vld [vmem:[%s6 + $0x10] sm:$0xf]
        %v417 = vld [vmem:[%s6 + $0x14] sm:$0xf]
        %v418 = vld [vmem:[%s6 + $0x18] sm:$0xf]
        %v419 = vld [vmem:[%s6 + $0x1c] sm:$0xf]
        %v420 = vld [vmem:[%s6 + $0x20] sm:$0xf]
        %v421 = vld [vmem:[%s6 + $0x24] sm:$0xf]
        %v422 = vld [vmem:[%s6 + $0x28] sm:$0xf]
        %v423 = vld [vmem:[%s6 + $0x2c] sm:$0xf]
        %v424 = vld [vmem:[%s6 + $0x30] sm:$0xf]
        %v425 = vld [vmem:[%s6 + $0x34] sm:$0xf]
        %v426 = vld [vmem:[%s6 + $0x38] sm:$0xf]
        %v427 = vld [vmem:[%s6 + $0x3c] sm:$0xf]
        %v430 = vunpack.c.l.b16 %v410
        %v431 = vunpack.c.l.b16 %v411
        %v432 = vpack.c.b16 %v431, %v430
        %v450 = vunpack.c.l.b16 %v412
        %v451 = vunpack.c.l.b16 %v413
        %v452 = vunpack.c.l.b16 %v414
        %v453 = vunpack.c.l.b16 %v415
        %v454 = vunpack.c.l.b16 %v416
        %v455 = vunpack.c.l.b16 %v417
        %v456 = vunpack.c.l.b16 %v418
        %v457 = vunpack.c.l.b16 %v419
        %v458 = vunpack.c.l.b16 %v420
        %v459 = vunpack.c.l.b16 %v421
        %v460 = vunpack.c.l.b16 %v422
        %v461 = vunpack.c.l.b16 %v423
        %v462 = vunpack.c.l.b16 %v424
        %v463 = vunpack.c.l.b16 %v425
        %v464 = vunpack.c.l.b16 %v426
        %v465 = vunpack.c.l.b16 %v427
        %v466 = vpack.c.b16 %v451, %v450
        %v467 = vpack.c.b16 %v453, %v452
        %v468 = vpack.c.b16 %v455, %v454
        %v469 = vpack.c.b16 %v457, %v456
        %v470 = vpack.c.b16 %v459, %v458
        %v471 = vpack.c.b16 %v461, %v460
        %v472 = vpack.c.b16 %v463, %v462
        %v473 = vpack.c.b16 %v465, %v464
        %482 = vmatprep.subr.bf16.mxu0 0
        %483 = vmatpush1.bf16.msra.mxu0 %v466
        %484 = vmatprep.subr.bf16.mxu0 0
        %485 = vmatpush1.bf16.msra.mxu0 %v467
        %486 = vmatprep.subr.bf16.mxu0 0
        %487 = vmatpush1.bf16.msra.mxu0 %v468
        %488 = vmatprep.subr.bf16.mxu0 0
        %489 = vmatpush1.bf16.msra.mxu0 %v469
        %490 = vmatprep.subr.bf16.mxu0 0
        %491 = vmatpush1.bf16.msra.mxu0 %v470
        %492 = vmatprep.subr.bf16.mxu0 0
        %493 = vmatpush1.bf16.msra.mxu0 %v471
        %494 = vmatprep.subr.bf16.mxu0 0
        %495 = vmatpush1.bf16.msra.mxu0 %v472
        %496 = vmatprep.subr.bf16.mxu0 0
        %497 = vmatpush1.bf16.msra.mxu0 %v473
        %498 = vmatprep.subr.bf16.mxu0 0
        %499 = vmatpush1.bf16.msra.mxu0 0
        %500 = vmatprep.subr.bf16.mxu0 0
        %501 = vmatpush1.bf16.msra.mxu0 0
        %502 = vmatprep.subr.bf16.mxu0 0
        %503 = vmatpush1.bf16.msra.mxu0 0
        %504 = vmatprep.subr.bf16.mxu0 0
        %505 = vmatpush1.bf16.msra.mxu0 0
        %506 = vmatprep.subr.bf16.mxu0 0
        %507 = vmatpush1.bf16.msra.mxu0 0
        %508 = vmatprep.subr.bf16.mxu0 0
        %509 = vmatpush1.bf16.msra.mxu0 0
        %510 = vmatprep.subr.bf16.mxu0 0
        %511 = vmatpush1.bf16.msra.mxu0 0
        %512 = vmatprep.subr.bf16.mxu0 0
        %513 = vmatpush1.bf16.msra.mxu0 0
        %514 = vmatprep.mubr.bf16.mxu0 0
        %515 = vmatmul.mubr.bf16.gmra.mrb[0].mxu0 %v432
        %v516 = vpop.f32.mrb[0].mxu0
        %v517 = vadd.f32 0.0, %v516
        %v518 = vpop.f32.mrb[0].mxu0
        %v519 = vpop.f32.mrb[0].mxu0
        %v520 = vadd.f32 0.0, %v519
        %v521 = vpop.f32.mrb[0].mxu0
        %522 = vdwg.mxu0
        %s523 = smul.u32 %s35, 16
        %v524 = vlaneseq
        %v525 = vshrl.u32 %v524, 7
        %v526 = vadd.s32 %v525, 8
        %v527 = vstv %s523
        %v528 = vadd.s32 %v527, %v525
        %v529 = vadd.s32 %v527, %v526
        %s530 = sld [smem:[#allocation3 + %s34]]
        %v531 = vstv %s530
        %vm532 = vcmp.lt.s32.totalorder %v528, %v531
        %vm533 = vcmp.lt.s32.totalorder %v529, %v531
        %v534 = vld [vmem:[%s5] sm:$0xf]
        %v535 = vld [vmem:[%s5 + $0x4] sm:$0xf]
        %v536 = vld [vmem:[%s5 + $0x8] sm:$0xf]
        %v537 = vld [vmem:[%s5 + $0xc] sm:$0xf]
        %v538 = vld [vmem:[%s5 + $0x10] sm:$0xf]
        %v539 = vld [vmem:[%s5 + $0x14] sm:$0xf]
        %v540 = vld [vmem:[%s5 + $0x18] sm:$0xf]
        %v541 = vld [vmem:[%s5 + $0x1c] sm:$0xf]
        %v542 = vld [vmem:[%s5 + $0x20] sm:$0xf]
        %v543 = vld [vmem:[%s5 + $0x24] sm:$0xf]
        %v544 = vld [vmem:[%s5 + $0x28] sm:$0xf]
        %v545 = vld [vmem:[%s5 + $0x2c] sm:$0xf]
        %v546 = vld [vmem:[%s5 + $0x30] sm:$0xf]
        %v547 = vld [vmem:[%s5 + $0x34] sm:$0xf]
        %v548 = vld [vmem:[%s5 + $0x38] sm:$0xf]
        %v549 = vld [vmem:[%s5 + $0x3c] sm:$0xf]
        %v550 = vld [vmem:[%s7] sm:$0xf]
        %v551 = vld [vmem:[%s7 + $0x4] sm:$0xf]
        %v552 = vld [vmem:[%s7 + $0x8] sm:$0xf]
        %v553 = vld [vmem:[%s7 + $0xc] sm:$0xf]
        %v554 = vld [vmem:[%s7 + $0x10] sm:$0xf]
        %v555 = vld [vmem:[%s7 + $0x14] sm:$0xf]
        %v556 = vld [vmem:[%s7 + $0x18] sm:$0xf]
        %v557 = vld [vmem:[%s7 + $0x1c] sm:$0xf]
        %v558 = vld [vmem:[%s7 + $0x20] sm:$0xf]
        %v559 = vld [vmem:[%s7 + $0x24] sm:$0xf]
        %v560 = vld [vmem:[%s7 + $0x28] sm:$0xf]
        %v561 = vld [vmem:[%s7 + $0x2c] sm:$0xf]
        %v562 = vld [vmem:[%s7 + $0x30] sm:$0xf]
        %v563 = vld [vmem:[%s7 + $0x34] sm:$0xf]
        %v564 = vld [vmem:[%s7 + $0x38] sm:$0xf]
        %v565 = vld [vmem:[%s7 + $0x3c] sm:$0xf]
        %v566 = vld [vmem:[%s8] sm:$0x1]
        %v567 = vld [vmem:[%s392] sm:$0xf]
        %v568 = vld [vmem:[%s392 + $0x4] sm:$0xf]
        %v569 = vunpack.c.l.bf16 %v567
        %v570 = vunpack.c.l.bf16 %v568
        %v571 = vld [vmem:[%s407] sm:$0x3]
        %v574 = vunpack.c.l.b16 %v567
        %v575 = vunpack.c.l.b16 %v568
        %v576 = vpack.c.b16 %v575, %v574
        %v594 = vunpack.c.l.b16 %v534
        %v595 = vunpack.c.l.b16 %v535
        %v596 = vunpack.c.l.b16 %v536
        %v597 = vunpack.c.l.b16 %v537
        %v598 = vunpack.c.l.b16 %v538
        %v599 = vunpack.c.l.b16 %v539
        %v600 = vunpack.c.l.b16 %v540
        %v601 = vunpack.c.l.b16 %v541
        %v602 = vunpack.c.l.b16 %v542
        %v603 = vunpack.c.l.b16 %v543
        %v604 = vunpack.c.l.b16 %v544
        %v605 = vunpack.c.l.b16 %v545
        %v606 = vunpack.c.l.b16 %v546
        %v607 = vunpack.c.l.b16 %v547
        %v608 = vunpack.c.l.b16 %v548
        %v609 = vunpack.c.l.b16 %v549
        %v610 = vpack.c.b16 %v595, %v594
        %v611 = vpack.c.b16 %v597, %v596
        %v612 = vpack.c.b16 %v599, %v598
        %v613 = vpack.c.b16 %v601, %v600
        %v614 = vpack.c.b16 %v603, %v602
        %v615 = vpack.c.b16 %v605, %v604
        %v616 = vpack.c.b16 %v607, %v606
        %v617 = vpack.c.b16 %v609, %v608
        %626 = vmatprep.subr.bf16.mxu0 0
        %627 = vmatpush1.bf16.msra.mxu0 %v610
        %628 = vmatprep.subr.bf16.mxu0 0
        %629 = vmatpush1.bf16.msra.mxu0 %v611
        %630 = vmatprep.subr.bf16.mxu0 0
        %631 = vmatpush1.bf16.msra.mxu0 %v612
        %632 = vmatprep.subr.bf16.mxu0 0
        %633 = vmatpush1.bf16.msra.mxu0 %v613
        %634 = vmatprep.subr.bf16.mxu0 0
        %635 = vmatpush1.bf16.msra.mxu0 %v614
        %636 = vmatprep.subr.bf16.mxu0 0
        %637 = vmatpush1.bf16.msra.mxu0 %v615
        %638 = vmatprep.subr.bf16.mxu0 0
        %639 = vmatpush1.bf16.msra.mxu0 %v616
        %640 = vmatprep.subr.bf16.mxu0 0
        %641 = vmatpush1.bf16.msra.mxu0 %v617
        %642 = vmatprep.subr.bf16.mxu0 0
        %643 = vmatpush1.bf16.msra.mxu0 0
        %644 = vmatprep.subr.bf16.mxu0 0
        %645 = vmatpush1.bf16.msra.mxu0 0
        %646 = vmatprep.subr.bf16.mxu0 0
        %647 = vmatpush1.bf16.msra.mxu0 0
        %648 = vmatprep.subr.bf16.mxu0 0
        %649 = vmatpush1.bf16.msra.mxu0 0
        %650 = vmatprep.subr.bf16.mxu0 0
        %651 = vmatpush1.bf16.msra.mxu0 0
        %652 = vmatprep.subr.bf16.mxu0 0
        %653 = vmatpush1.bf16.msra.mxu0 0
        %654 = vmatprep.subr.bf16.mxu0 0
        %655 = vmatpush1.bf16.msra.mxu0 0
        %656 = vmatprep.subr.bf16.mxu0 0
        %657 = vmatpush1.bf16.msra.mxu0 0
        %658 = vmatprep.mubr.bf16.mxu0 0
        %659 = vmatmul.mubr.bf16.gmra.mrb[0].mxu0 %v576
        %v660 = vpop.f32.mrb[0].mxu0
        %v661 = vadd.f32 0.0, %v660
        %v662 = vpop.f32.mrb[0].mxu0
        %v663 = vpop.f32.mrb[0].mxu0
        %v664 = vadd.f32 0.0, %v663
        %v665 = vpop.f32.mrb[0].mxu0
        %666 = vdwg.mxu0
        %v667 = vadd.f32 %v517, %v661
        %v668 = vadd.f32 %v520, %v664
        %v669 = vlaneseq
        %v670 = vshrl.u32 %v669, 7
        %v671 = vsub.s32 0, %v670
        %v672 = vrot.slane %v571, %v671
        %v673 = vadd.f32 %v667, %v672
        %v674 = vadd.f32 %v668, %v672
        %v675 = vmul.f32 %v673, %v673
        %v676 = vmul.f32 %v674, %v674
        %v677 = vmul.f32 %v673, %v675
        %v678 = vmul.f32 %v674, %v676
        %v679 = vmul.f32 %v677, 0.044715
        %v680 = vmul.f32 %v678, 0.044715
        %v681 = vadd.f32 %v673, %v679
        %v682 = vadd.f32 %v674, %v680
        %v683 = vmul.f32 %v681, 0.7978846
        %v684 = vmul.f32 %v682, 0.7978846
        %v685 = vtanh.pop %v683
        %v686 = vtanh.pop %v684
        %v687 = vadd.f32 %v685, 1.0
        %v688 = vadd.f32 %v686, 1.0
        %v689 = vmul.f32 %v687, 0.5
        %v690 = vmul.f32 %v688, 0.5
        %v691 = vmul.f32 %v673, %v689
        %v692 = vmul.f32 %v674, %v690
        %v693 = vpack.c.bf16 %v692, %v691
        %v695 = vlaneseq
        %v696 = vshrl.u32 %v695, 7
        %v697 = vsub.s32 0, %v696
        %v698 = vrot.slane %v566, %v697
        %v716 = vunpack.c.l.b16 %v550
        %v717 = vunpack.c.l.b16 %v551
        %v718 = vunpack.c.l.b16 %v552
        %v719 = vunpack.c.l.b16 %v553
        %v720 = vunpack.c.l.b16 %v554
        %v721 = vunpack.c.l.b16 %v555
        %v722 = vunpack.c.l.b16 %v556
        %v723 = vunpack.c.l.b16 %v557
        %v724 = vunpack.c.l.b16 %v558
        %v725 = vunpack.c.l.b16 %v559
        %v726 = vunpack.c.l.b16 %v560
        %v727 = vunpack.c.l.b16 %v561
        %v728 = vunpack.c.l.b16 %v562
        %v729 = vunpack.c.l.b16 %v563
        %v730 = vunpack.c.l.b16 %v564
        %v731 = vunpack.c.l.b16 %v565
        %v732 = vpack.c.b16 %v717, %v716
        %v733 = vpack.c.b16 %v719, %v718
        %v734 = vpack.c.b16 %v721, %v720
        %v735 = vpack.c.b16 %v723, %v722
        %v736 = vpack.c.b16 %v725, %v724
        %v737 = vpack.c.b16 %v727, %v726
        %v738 = vpack.c.b16 %v729, %v728
        %v739 = vpack.c.b16 %v731, %v730
        %748 = vmatprep.subr.bf16.mxu0 0
        %749 = vmatpush1.bf16.msra.mxu0 %v732
        %750 = vmatprep.subr.bf16.mxu0 0
        %751 = vmatpush1.bf16.msra.mxu0 %v733
        %752 = vmatprep.subr.bf16.mxu0 0
        %753 = vmatpush1.bf16.msra.mxu0 %v734
        %754 = vmatprep.subr.bf16.mxu0 0
        %755 = vmatpush1.bf16.msra.mxu0 %v735
        %756 = vmatprep.subr.bf16.mxu0 0
        %757 = vmatpush1.bf16.msra.mxu0 %v736
        %758 = vmatprep.subr.bf16.mxu0 0
        %759 = vmatpush1.bf16.msra.mxu0 %v737
        %760 = vmatprep.subr.bf16.mxu0 0
        %761 = vmatpush1.bf16.msra.mxu0 %v738
        %762 = vmatprep.subr.bf16.mxu0 0
        %763 = vmatpush1.bf16.msra.mxu0 %v739
        %764 = vmatprep.subr.bf16.mxu0 0
        %765 = vmatpush1.bf16.msra.mxu0 0
        %766 = vmatprep.subr.bf16.mxu0 0
        %767 = vmatpush1.bf16.msra.mxu0 0
        %768 = vmatprep.subr.bf16.mxu0 0
        %769 = vmatpush1.bf16.msra.mxu0 0
        %770 = vmatprep.subr.bf16.mxu0 0
        %771 = vmatpush1.bf16.msra.mxu0 0
        %772 = vmatprep.subr.bf16.mxu0 0
        %773 = vmatpush1.bf16.msra.mxu0 0
        %774 = vmatprep.subr.bf16.mxu0 0
        %775 = vmatpush1.bf16.msra.mxu0 0
        %776 = vmatprep.subr.bf16.mxu0 0
        %777 = vmatpush1.bf16.msra.mxu0 0
        %778 = vmatprep.subr.bf16.mxu0 0
        %779 = vmatpush1.bf16.msra.mxu0 0
        %780 = vmatprep.mubr.bf16.mxu0 0
        %781 = vmatmul.mubr.bf16.gmra.mrb[0].mxu0 %v693
        %v782 = vpop.f32.mrb[0].mxu0
        %v783 = vadd.f32 %v698, %v782
        %v784 = vpop.f32.mrb[0].mxu0
        %v785 = vpop.f32.mrb[0].mxu0
        %v786 = vadd.f32 %v698, %v785
        %v787 = vpop.f32.mrb[0].mxu0
        %788 = vdwg.mxu0
        %s789 = smul.u32 %s34, 128
        %s790 = sld [smem:[#allocation4 + %s789]]
        %v791 = vstv %s790
        %v792 = vmul.f32 %v791, %v783
        %v793 = vmul.f32 %v791, %v786
        %v794 = vadd.f32 %v569, %v792
        %v795 = vadd.f32 %v570, %v793
        %v796 = vpack.c.bf16 %v795, %v794
        %797 = vmatprep.subr.bf16.mxu0 0
        %798 = vmatpush1.bf16.msra.mxu0 %v610
        %799 = vmatprep.subr.bf16.mxu0 0
        %800 = vmatpush1.bf16.msra.mxu0 %v611
        %801 = vmatprep.subr.bf16.mxu0 0
        %802 = vmatpush1.bf16.msra.mxu0 %v612
        %803 = vmatprep.subr.bf16.mxu0 0
        %804 = vmatpush1.bf16.msra.mxu0 %v613
        %805 = vmatprep.subr.bf16.mxu0 0
        %806 = vmatpush1.bf16.msra.mxu0 %v614
        %807 = vmatprep.subr.bf16.mxu0 0
        %808 = vmatpush1.bf16.msra.mxu0 %v615
        %809 = vmatprep.subr.bf16.mxu0 0
        %810 = vmatpush1.bf16.msra.mxu0 %v616
        %811 = vmatprep.subr.bf16.mxu0 0
        %812 = vmatpush1.bf16.msra.mxu0 %v617
        %813 = vmatprep.subr.bf16.mxu0 0
        %814 = vmatpush1.bf16.msra.mxu0 0
        %815 = vmatprep.subr.bf16.mxu0 0
        %816 = vmatpush1.bf16.msra.mxu0 0
        %817 = vmatprep.subr.bf16.mxu0 0
        %818 = vmatpush1.bf16.msra.mxu0 0
        %819 = vmatprep.subr.bf16.mxu0 0
        %820 = vmatpush1.bf16.msra.mxu0 0
        %821 = vmatprep.subr.bf16.mxu0 0
        %822 = vmatpush1.bf16.msra.mxu0 0
        %823 = vmatprep.subr.bf16.mxu0 0
        %824 = vmatpush1.bf16.msra.mxu0 0
        %825 = vmatprep.subr.bf16.mxu0 0
        %826 = vmatpush1.bf16.msra.mxu0 0
        %827 = vmatprep.subr.bf16.mxu0 0
        %828 = vmatpush1.bf16.msra.mxu0 0
        %829 = vmatprep.mubr.bf16.mxu0 0
        %830 = vmatmul.mubr.bf16.gmra.mrb[0].mxu0 %v796
        %v831 = vpop.f32.mrb[0].mxu0
        %v832 = vadd.f32 0.0, %v831
        %v833 = vpop.f32.mrb[0].mxu0
        %v834 = vpop.f32.mrb[0].mxu0
        %v835 = vadd.f32 0.0, %v834
        %v836 = vpop.f32.mrb[0].mxu0
        %837 = vdwg.mxu0
        %v838 = vadd.f32 %v517, %v832
        %v839 = vadd.f32 %v520, %v835
        %v840 = vlaneseq
        %v841 = vshrl.u32 %v840, 7
        %v842 = vsub.s32 1, %v841
        %v843 = vrot.slane %v571, %v842
        %v844 = vadd.f32 %v838, %v843
        %v845 = vadd.f32 %v839, %v843
        %v846 = vmul.f32 %v844, %v844
        %v847 = vmul.f32 %v845, %v845
        %v848 = vmul.f32 %v844, %v846
        %v849 = vmul.f32 %v845, %v847
        %v850 = vmul.f32 %v848, 0.044715
        %v851 = vmul.f32 %v849, 0.044715
        %v852 = vadd.f32 %v844, %v850
        %v853 = vadd.f32 %v845, %v851
        %v854 = vmul.f32 %v852, 0.7978846
        %v855 = vmul.f32 %v853, 0.7978846
        %v856 = vtanh.pop %v854
        %v857 = vtanh.pop %v855
        %v858 = vadd.f32 %v856, 1.0
        %v859 = vadd.f32 %v857, 1.0
        %v860 = vmul.f32 %v858, 0.5
        %v861 = vmul.f32 %v859, 0.5
        %v862 = vmul.f32 %v844, %v860
        %v863 = vmul.f32 %v845, %v861
        %v864 = vpack.c.bf16 %v863, %v862
        %865 = vmatprep.subr.bf16.mxu0 0
        %866 = vmatpush1.bf16.msra.mxu0 %v732
        %867 = vmatprep.subr.bf16.mxu0 0
        %868 = vmatpush1.bf16.msra.mxu0 %v733
        %869 = vmatprep.subr.bf16.mxu0 0
        %870 = vmatpush1.bf16.msra.mxu0 %v734
        %871 = vmatprep.subr.bf16.mxu0 0
        %872 = vmatpush1.bf16.msra.mxu0 %v735
        %873 = vmatprep.subr.bf16.mxu0 0
        %874 = vmatpush1.bf16.msra.mxu0 %v736
        %875 = vmatprep.subr.bf16.mxu0 0
        %876 = vmatpush1.bf16.msra.mxu0 %v737
        %877 = vmatprep.subr.bf16.mxu0 0
        %878 = vmatpush1.bf16.msra.mxu0 %v738
        %879 = vmatprep.subr.bf16.mxu0 0
        %880 = vmatpush1.bf16.msra.mxu0 %v739
        %881 = vmatprep.subr.bf16.mxu0 0
        %882 = vmatpush1.bf16.msra.mxu0 0
        %883 = vmatprep.subr.bf16.mxu0 0
        %884 = vmatpush1.bf16.msra.mxu0 0
        %885 = vmatprep.subr.bf16.mxu0 0
        %886 = vmatpush1.bf16.msra.mxu0 0
        %887 = vmatprep.subr.bf16.mxu0 0
        %888 = vmatpush1.bf16.msra.mxu0 0
        %889 = vmatprep.subr.bf16.mxu0 0
        %890 = vmatpush1.bf16.msra.mxu0 0
        %891 = vmatprep.subr.bf16.mxu0 0
        %892 = vmatpush1.bf16.msra.mxu0 0
        %893 = vmatprep.subr.bf16.mxu0 0
        %894 = vmatpush1.bf16.msra.mxu0 0
        %895 = vmatprep.subr.bf16.mxu0 0
        %896 = vmatpush1.bf16.msra.mxu0 0
        %897 = vmatprep.mubr.bf16.mxu0 0
        %898 = vmatmul.mubr.bf16.gmra.mrb[0].mxu0 %v864
        %v899 = vpop.f32.mrb[0].mxu0
        %v900 = vadd.f32 %v698, %v899
        %v901 = vpop.f32.mrb[0].mxu0
        %v902 = vpop.f32.mrb[0].mxu0
        %v903 = vadd.f32 %v698, %v902
        %v904 = vpop.f32.mrb[0].mxu0
        %905 = vdwg.mxu0
        %s906 = sadd.s32 %s789, 1
        %s907 = sld [smem:[#allocation4 + %s906]]
        %v908 = vstv %s907
        %v909 = vmul.f32 %v908, %v900
        %v910 = vmul.f32 %v908, %v903
        %v911 = vadd.f32 %v794, %v909
        %v912 = vadd.f32 %v795, %v910
        %v913 = vsel %vm532, 1, 0
        %v914 = vsel %vm533, 1, 0
        %vm915 = vcmp.eq.s32.totalorder %v913, 1
        %vm916 = vcmp.eq.s32.totalorder %v914, 1
        %v917 = vsel %vm915, %v911, %v569
        %v918 = vsel %vm916, %v912, %v570
        %919 = vst [vmem:[%s383] sm:$0xff] %v917
        %920 = vst [vmem:[%s383 + $0x8] sm:$0xff] %v918
        %s921 = sand.u32 %s239, 1
        %s922 = scalar_lea.sflag [#allocation5], %s921
        %s923 = sand.u32 %s239, 1
        %s924 = smul.addr %s923, 16
        %s925 = scalar_lea.vmem [#allocation7], %s924
        // Predicated region
        $region57: #{_core_forward.3} parent=51 // pred_check
          %p926 = pneg %p249
        $region58: #{_core_forward.3} parent=51 // pred_check_branch
          %928 = sbr.rel (%p926) target = $region60
        $region59: #{_core_forward.3} parent=51 // pred_region
          %s929 = smul.u32 2, %s35
          %s931 = ssub.s32 256, 256
          %932 = vsyncadd %s922, %s931
          %s933 = smul.addr %s34, 2
          %s934 = sadd.s32 %s929, %s933
          %s935 = smul.addr %s934, 128
          %s936 = scalar_lea.hbm %s9, %s935
          %s937 = sshll.u32 %s925, 4
          %s938 = int_to_ptr.vmem [resolvable:$true] %s937
          %943 = dma.vmem_to_hbm [thread:$0]  %s938, 256, %s936, %s922, 128, 128, 8
        $region60: #{_core_forward.3} parent=51 // pred_fallthru
          _
      $region52: #{_core_forward.3} parent=5 // pred_fallthru
        _
      %p944 = scmp.le.s32.totalorder 2, %s25
      // Predicated region
      $region61: #{_core_forward.3} parent=5 // pred_check
        %p945 = pneg %p944
      $region62: #{_core_forward.3} parent=5 // pred_check_branch
        %947 = sbr.rel (%p945) target = $region64
      $region63: #{_core_forward.3} parent=5 // pred_region
        %s948 = ssub.s32 %s25, 2
        // Predicated region
        $region65: #{_core_forward.3} parent=63 // pred_check
          %p949 = pneg %p255
        $region66: #{_core_forward.3} parent=63 // pred_check_branch
          %951 = sbr.rel (%p949) target = $region68
        $region67: #{_core_forward.3} parent=63 // pred_region
          %s952 = sand.u32 %s240, 1
          %s953 = scalar_lea.sflag [#allocation5], %s952
          %s954 = sand.u32 %s240, 1
          %s955 = smul.addr %s954, 16
          %s956 = scalar_lea.vmem [#allocation7], %s955
          %957 = dma.done %s953, 256
        $region68: #{_core_forward.3} parent=63 // pred_fallthru
          _
      $region64: #{_core_forward.3} parent=5 // pred_fallthru
        _
    $region6: #{_core_forward.3} parent=1 // loop_footer
      %s29 = sadd.s32 1, %s25
    $region7: #{_core_forward.3} parent=1 // loop_footer_branch
      %24 = sbr.rel target = $region3
    $region8: #{_core_forward.3} parent=1 // loop_exit
      _
    %958 = vsyncpa [#allocation5], 1
    %s959 = scalar_lea.sflag [#allocation5], 1
    %960 = vsyncpa %s959, 1
    %961 = vsyncpa [#allocation6], 1
    %s962 = scalar_lea.sflag [#allocation6], 1
    %963 = vsyncpa %s962, 1

</llo_original>
